<compile_context>
chip_gen: v7x
topology: tpu7x:2x2x1
jax: 0.10.0
libtpu: 0.0.40
codegen_flags: <defaults>
</compile_context>

<pallas_src>
import functools
import math

import jax
import jax.numpy as jnp
from jax import lax
from jax.experimental import pallas as pl
from jax.experimental.pallas import tpu as pltpu


# ----------------------------- in-kernel helpers -----------------------------

def _layer_norm(x, gamma, beta, eps):
    # PyTorch nn.LayerNorm semantics: biased variance, eps inside the sqrt.
    mean = jnp.mean(x, axis=-1, keepdims=True)
    xc = x - mean
    var = jnp.mean(xc * xc, axis=-1, keepdims=True)
    return xc * lax.rsqrt(var + eps) * gamma + beta


def _gelu_erf(x):
    # erf-based GELU (matches the module's ACT2FN['gelu']):
    #   x * 0.5 * (1 + erf(x / sqrt(2)))
    # erf via Abramowitz–Stegun 7.1.26 rational approximation (|err| <= 1.5e-7);
    # Mosaic has no erf primitive.  TODO(synk): VALU-heavy; a tanh-form GELU
    # would be cheaper but changes the math (gelu vs gelu_new).
    z = x * (1.0 / math.sqrt(2.0))
    az = jnp.abs(z)
    t = 1.0 / (1.0 + 0.3275911 * az)
    poly = ((((1.061405429 * t - 1.453152027) * t + 1.421413741) * t
             - 0.284496736) * t + 0.254829592) * t
    erf_abs = 1.0 - poly * jnp.exp(-az * az)
    erf = jnp.where(z < 0.0, -erf_abs, erf_abs)
    return x * 0.5 * (1.0 + erf)


# ------------------------------- fused kernel --------------------------------

def _albert_layer_kernel(xf_ref, xq_ref, mask_ref,
                         wq_ref, bq_ref, wkv_ref, bkv_ref,
                         wo_ref, bo_ref, g1_ref, be1_ref,
                         w1_ref, b1_ref, w2_ref, b2_ref,
                         g2_ref, be2_ref,
                         o_ref, ctx_ref,
                         *, num_heads, head_dim, eps):
    f32 = jnp.float32
    bf16 = jnp.bfloat16
    H = num_heads * head_dim

    x_full_bf = xf_ref[0].astype(bf16)       # [S, H]   source of keys / values
    x_q_f32 = xq_ref[0].astype(f32)          # [TQ, H]  query-tile rows (residual)
    x_q_bf = x_q_f32.astype(bf16)

    S = x_full_bf.shape[0]
    TQ = x_q_bf.shape[0]

    # Projections: bf16 operands, f32 accumulation on the MXU.
    q = jnp.dot(x_q_bf, wq_ref[...], preferred_element_type=f32) + bq_ref[...]        # [TQ, H]
    kv = jnp.dot(x_full_bf, wkv_ref[...], preferred_element_type=f32) + bkv_ref[...]  # [S, 2H]

    q = q * (1.0 / math.sqrt(head_dim))      # pre-scale queries (smaller tensor)
    q_bf = q.astype(bf16)
    k_bf = kv[:, :H].astype(bf16)
    v_bf = kv[:, H:].astype(bf16)

    # Hoist the additive-mask broadcast out of the per-head loop.
    mask2d = jnp.broadcast_to(mask_ref[0].astype(f32), (TQ, S))

    # Static per-head loop; each head's context goes straight into the VMEM
    # scratch slab (no NH-way lane concatenate at the end).
    for h in range(num_heads):
        lo = h * head_dim
        qh = q_bf[:, lo:lo + head_dim]
        kh = k_bf[:, lo:lo + head_dim]
        vh = v_bf[:, lo:lo + head_dim]
        s = lax.dot_general(qh, kh, (((1,), (1,)), ((), ())),
                            preferred_element_type=f32)            # [TQ, S]
        s = s + mask2d
        s = s - jnp.max(s, axis=-1, keepdims=True)
        p = jnp.exp(s)
        p = p * pl.reciprocal(jnp.sum(p, axis=-1, keepdims=True), approx=True)
        ctx_ref[:, lo:lo + head_dim] = jnp.dot(p.astype(bf16), vh,
                                               preferred_element_type=f32)

    ctx_bf = ctx_ref[...].astype(bf16)                               # [TQ, H]

    # Attention output projection + residual + LayerNorm.
    proj = jnp.dot(ctx_bf, wo_ref[...], preferred_element_type=f32) + bo_ref[...]
    attn_out = _layer_norm(x_q_f32 + proj, g1_ref[...], be1_ref[...], eps)

    # Feed-forward (erf-gelu) + residual + full-layer LayerNorm.
    h1 = jnp.dot(attn_out.astype(bf16), w1_ref[...],
                 preferred_element_type=f32) + b1_ref[...]
    h1 = _gelu_erf(h1)
    ff = jnp.dot(h1.astype(bf16), w2_ref[...],
                 preferred_element_type=f32) + b2_ref[...]
    out = _layer_norm(ff + attn_out, g2_ref[...], be2_ref[...], eps)

    o_ref[0] = out.astype(o_ref.dtype)


# --------------------------------- wrappers ----------------------------------

def _pick_q_tile(seq_len):
    for t in (256, 128, 64, 32, 16, 8):
        if seq_len >= t and seq_len % t == 0:
            return t
    return seq_len


def _albert_layer_call(x, mask, p, *, num_heads, eps):
    """One AlbertLayer forward: x [B,S,H], mask [B,1,S] additive, p = param dict."""
    B, S, H = x.shape
    I = p["w1"].shape[1]
    head_dim = H // num_heads
    q_tile = _pick_q_tile(S)
    n_q = S // q_tile

    bf16 = jnp.bfloat16
    f32 = jnp.float32

    # bf16 weight matrices (halves resident VMEM + DMA bytes), f32 biases / LN.
    wq = p["wq"].astype(bf16)
    wkv = jnp.concatenate([p["wk"], p["wv"]], axis=1).astype(bf16)   # [H, 2H]
    bkv = jnp.concatenate([p["bk"], p["bv"]], axis=1).astype(f32)    # [1, 2H]
    wo = p["wo"].astype(bf16)
    w1 = p["w1"].astype(bf16)
    w2 = p["w2"].astype(bf16)

    kern = functools.partial(_albert_layer_kernel, num_heads=num_heads,
                             head_dim=head_dim, eps=eps)

    def wspec(shape):
        nd = len(shape)
        return pl.BlockSpec(shape, lambda b, qi, _nd=nd: (0,) * _nd)

    in_specs = [
        pl.BlockSpec((1, S, H), lambda b, qi: (b, 0, 0)),        # full seq (K/V)
        pl.BlockSpec((1, q_tile, H), lambda b, qi: (b, qi, 0)),  # query tile
        pl.BlockSpec((1, 1, S), lambda b, qi: (b, 0, 0)),        # attention mask
        wspec((H, H)), wspec((1, H)),                            # query
        wspec((H, 2 * H)), wspec((1, 2 * H)),                    # fused key|value
        wspec((H, H)), wspec((1, H)),                            # attention.dense
        wspec((1, H)), wspec((1, H)),                            # attention.LayerNorm
        wspec((H, I)), wspec((1, I)),                            # ffn
        wspec((I, H)), wspec((1, H)),                            # ffn_output
        wspec((1, H)), wspec((1, H)),                            # full_layer_layer_norm
    ]
    out_spec = pl.BlockSpec((1, q_tile, H), lambda b, qi: (b, qi, 0))

    cost = pl.CostEstimate(
        flops=int(2 * B * S * (4 * H * H + 2 * S * H + 2 * H * I)),
        transcendentals=int(B * S * (num_heads * S + I)),
        bytes_accessed=int((4 * H * H + 2 * H * I) * 2 + (3 * B * S * H + B * S) * 4),
    )

    return pl.pallas_call(
        kern,
        out_shape=jax.ShapeDtypeStruct((B, S, H), x.dtype),
        grid=(B, n_q),
        in_specs=in_specs,
        out_specs=out_spec,
        scratch_shapes=[pltpu.VMEM((q_tile, H), jnp.float32)],
        compiler_params=pltpu.CompilerParams(
            dimension_semantics=("parallel", "parallel"),
            vmem_limit_bytes=64 * 1024 * 1024),
        cost_estimate=cost,
    )(x, x, mask,
      wq, p["bq"], wkv, bkv,
      wo, p["bo"], p["ln1_g"], p["ln1_b"],
      w1, p["b1"], w2, p["b2"],
      p["ln2_g"], p["ln2_b"])


def albert_layer_group(hidden_states, attention_mask=None, layer_params=None, *,
                       num_heads, layer_norm_eps=1e-12, head_mask=None,
                       output_hidden_states=False):
    """Pallas implementation of AlbertLayerGroup.forward (eval mode).

    hidden_states  : [B, S, H]
    attention_mask : [B, 1, S] additive mask (0 keep, -10000 masked) or None
    layer_params   : list of per-layer parameter dicts (inner_group_num entries)
    Returns a tuple (hidden_states,) [+ (all_hidden_states,) if requested].
    """
    del head_mask  # TODO(synk): head_mask is not applied (the given reference
    #                forward never uses it either).
    B, S, H = hidden_states.shape
    if attention_mask is None:
        attention_mask = jnp.zeros((B, 1, S), hidden_states.dtype)

    all_hidden = ()
    for p in layer_params:
        hidden_states = _albert_layer_call(hidden_states, attention_mask, p,
                                           num_heads=num_heads,
                                           eps=layer_norm_eps)
        if output_hidden_states:
            all_hidden = all_hidden + (hidden_states,)

    outputs = (hidden_states,)
    if output_hidden_states:
        outputs = outputs + (all_hidden,)
    return outputs


# ------------------------------ pure-JAX reference ----------------------------

def _ref_layer(x, mask, p, *, num_heads, eps):
    hi = lax.Precision.HIGHEST
    B, S, H = x.shape
    dh = H // num_heads

    def ln(v, g, b):
        m = v.mean(-1, keepdims=True)
        c = v - m
        var = (c * c).mean(-1, keepdims=True)
        return c * lax.rsqrt(var + eps) * g + b

    q = jnp.einsum('bsh,hd->bsd', x, p['wq'], precision=hi) + p['bq']
    k = jnp.einsum('bsh,hd->bsd', x, p['wk'], precision=hi) + p['bk']
    v = jnp.einsum('bsh,hd->bsd', x, p['wv'], precision=hi) + p['bv']
    qh = q.reshape(B, S, num_heads, dh).transpose(0, 2, 1, 3)
    kh = k.reshape(B, S, num_heads, dh).transpose(0, 2, 1, 3)
    vh = v.reshape(B, S, num_heads, dh).transpose(0, 2, 1, 3)
    s = jnp.einsum('bnqd,bnkd->bnqk', qh, kh, precision=hi) / math.sqrt(dh)
    s = s + mask[:, None, :, :]
    probs = jax.nn.softmax(s, axis=-1)
    ctx = jnp.einsum('bnqk,bnkd->bnqd', probs, vh, precision=hi)
    ctx = ctx.transpose(0, 2, 1, 3).reshape(B, S, H)
    proj = jnp.einsum('bsh,hd->bsd', ctx, p['wo'], precision=hi) + p['bo']
    attn_out = ln(x + proj, p['ln1_g'], p['ln1_b'])
    h1 = jnp.einsum('bsh,hi->bsi', attn_out, p['w1'], precision=hi) + p['b1']
    h1 = h1 * 0.5 * (1.0 + jax.scipy.special.erf(h1 / math.sqrt(2.0)))
    ff = jnp.einsum('bsi,ih->bsh', h1, p['w2'], precision=hi) + p['b2']
    return ln(ff + attn_out, p['ln2_g'], p['ln2_b'])


# ----------------------------------- test -------------------------------------

if __name__ == "__main__":
    # Small config consistent with the module: hidden_size=32, num_heads=4,
    # intermediate_size=64, inner_group_num=2, batch=2, seq=8, eval mode.
    B, S, H, NH, I, NL = 2, 8, 32, 4, 64, 2
    eps = 1e-12

    key = jax.random.PRNGKey(0)
    keys = iter(jax.random.split(key, 64))

    def rnd(shape, scale=0.02):
        return jax.random.normal(next(keys), shape, jnp.float32) * scale

    layer_params = []
    for _ in range(NL):
        layer_params.append(dict(
            wq=rnd((H, H)), bq=rnd((1, H)),
            wk=rnd((H, H)), bk=rnd((1, H)),
            wv=rnd((H, H)), bv=rnd((1, H)),
            wo=rnd((H, H)), bo=rnd((1, H)),
            ln1_g=1.0 + rnd((1, H)), ln1_b=rnd((1, H)),
            w1=rnd((H, I)), b1=rnd((1, I)),
            w2=rnd((I, H)), b2=rnd((1, H)),
            ln2_g=1.0 + rnd((1, H)), ln2_b=rnd((1, H)),
        ))

    hidden = jax.random.normal(next(keys), (B, S, H), jnp.float32)
    # Additive attention mask (HF-style "extended" mask): mask the last two key
    # positions of the second sequence.
    mask = jnp.zeros((B, 1, S), jnp.float32)
    mask = mask.at[1, 0, S - 2:].set(-10000.0)

    out = albert_layer_group(hidden, mask, layer_params, num_heads=NH,
                             layer_norm_eps=eps)[0]
    jax.block_until_ready(out)

    # Pure-JAX f32 reference check.  Tolerance is loosened vs the previous f32
    # kernel because matmul operands now run in bf16 (intentional, per review).
    ref = hidden
    for p in layer_params:
        ref = _ref_layer(ref, mask, p, num_heads=NH, eps=eps)

    assert out.shape == (B, S, H)
    max_err = float(jnp.max(jnp.abs(out - ref)))
    assert jnp.allclose(out, ref, atol=1e-2, rtol=1e-2), f"max_err={max_err}"

    print("KERNEL_OK")
</pallas_src>

<mosaic_0001>
module attributes {stable_mosaic.version = 11 : i64} {
  func.func @_albert_layer_kernel(%arg0: i32, %arg1: i32, %arg2: memref<1x8x32xf32, #tpu.memory_space<vmem>>, %arg3: memref<1x8x32xf32, #tpu.memory_space<vmem>>, %arg4: memref<1x1x8xf32, #tpu.memory_space<vmem>>, %arg5: memref<32x32xbf16, #tpu.memory_space<vmem>>, %arg6: memref<1x32xf32, #tpu.memory_space<vmem>>, %arg7: memref<32x64xbf16, #tpu.memory_space<vmem>>, %arg8: memref<1x64xf32, #tpu.memory_space<vmem>>, %arg9: memref<32x32xbf16, #tpu.memory_space<vmem>>, %arg10: memref<1x32xf32, #tpu.memory_space<vmem>>, %arg11: memref<1x32xf32, #tpu.memory_space<vmem>>, %arg12: memref<1x32xf32, #tpu.memory_space<vmem>>, %arg13: memref<32x64xbf16, #tpu.memory_space<vmem>>, %arg14: memref<1x64xf32, #tpu.memory_space<vmem>>, %arg15: memref<64x32xbf16, #tpu.memory_space<vmem>>, %arg16: memref<1x32xf32, #tpu.memory_space<vmem>>, %arg17: memref<1x32xf32, #tpu.memory_space<vmem>>, %arg18: memref<1x32xf32, #tpu.memory_space<vmem>>, %arg19: memref<1x8x32xf32, #tpu.memory_space<vmem>>, %arg20: memref<8x32xf32, #tpu.memory_space<vmem>>) attributes {dimension_semantics = [#tpu.dimension_semantics<parallel>, #tpu.dimension_semantics<parallel>], iteration_bounds = array<i64: 2, 1>, scalar_prefetch = 0 : i64, scratch_operands = 1 : i64, tpu.core_type = #tpu.core_type<tc>, window_params = [{transform_indices = @transform_0, window_bounds = array<i64: 1, 8, 32>}, {transform_indices = @transform_1, window_bounds = array<i64: 1, 8, 32>}, {transform_indices = @transform_2, window_bounds = array<i64: 1, 1, 8>}, {pipeline_mode = #tpu.pipeline_mode<synchronous>, transform_indices = @transform_3, window_bounds = array<i64: 32, 32>}, {pipeline_mode = #tpu.pipeline_mode<synchronous>, transform_indices = @transform_4, window_bounds = array<i64: 1, 32>}, {pipeline_mode = #tpu.pipeline_mode<synchronous>, transform_indices = @transform_5, window_bounds = array<i64: 32, 64>}, {pipeline_mode = #tpu.pipeline_mode<synchronous>, transform_indices = @transform_6, window_bounds = array<i64: 1, 64>}, {pipeline_mode = #tpu.pipeline_mode<synchronous>, transform_indices = @transform_7, window_bounds = array<i64: 32, 32>}, {pipeline_mode = #tpu.pipeline_mode<synchronous>, transform_indices = @transform_8, window_bounds = array<i64: 1, 32>}, {pipeline_mode = #tpu.pipeline_mode<synchronous>, transform_indices = @transform_9, window_bounds = array<i64: 1, 32>}, {pipeline_mode = #tpu.pipeline_mode<synchronous>, transform_indices = @transform_10, window_bounds = array<i64: 1, 32>}, {pipeline_mode = #tpu.pipeline_mode<synchronous>, transform_indices = @transform_11, window_bounds = array<i64: 32, 64>}, {pipeline_mode = #tpu.pipeline_mode<synchronous>, transform_indices = @transform_12, window_bounds = array<i64: 1, 64>}, {pipeline_mode = #tpu.pipeline_mode<synchronous>, transform_indices = @transform_13, window_bounds = array<i64: 64, 32>}, {pipeline_mode = #tpu.pipeline_mode<synchronous>, transform_indices = @transform_14, window_bounds = array<i64: 1, 32>}, {pipeline_mode = #tpu.pipeline_mode<synchronous>, transform_indices = @transform_15, window_bounds = array<i64: 1, 32>}, {pipeline_mode = #tpu.pipeline_mode<synchronous>, transform_indices = @transform_16, window_bounds = array<i64: 1, 32>}, {transform_indices = @transform_17, window_bounds = array<i64: 1, 8, 32>}]} {
    %c0 = arith.constant 0 : index
    %c0_0 = arith.constant 0 : index
    %c0_1 = arith.constant 0 : index
    %0 = vector.load %arg2[%c0, %c0_0, %c0_1] : memref<1x8x32xf32, #tpu.memory_space<vmem>>, vector<1x8x32xf32>
    %1 = vector.shape_cast %0 : vector<1x8x32xf32> to vector<8x32xf32>
    %2 = arith.truncf %1 : vector<8x32xf32> to vector<8x32xbf16>
    %c0_2 = arith.constant 0 : index
    %c0_3 = arith.constant 0 : index
    %c0_4 = arith.constant 0 : index
    %3 = vector.load %arg3[%c0_2, %c0_3, %c0_4] : memref<1x8x32xf32, #tpu.memory_space<vmem>>, vector<1x8x32xf32>
    %4 = vector.shape_cast %3 : vector<1x8x32xf32> to vector<8x32xf32>
    %5 = arith.truncf %4 : vector<8x32xf32> to vector<8x32xbf16>
    %c0_5 = arith.constant 0 : index
    %c0_6 = arith.constant 0 : index
    %6 = vector.load %arg5[%c0_5, %c0_6] : memref<32x32xbf16, #tpu.memory_space<vmem>>, vector<32x32xbf16>
    %cst = arith.constant dense<0.000000e+00> : vector<8x32xf32>
    %7 = tpu.matmul %5, %6, %cst {dimension_numbers = #tpu.dot_dimension_numbers<[1], [0], [0], [1], [0, 0, 1, 1], [], []>} : vector<8x32xbf16>, vector<32x32xbf16>, vector<8x32xf32> -> vector<8x32xf32>
    %c0_7 = arith.constant 0 : index
    %c0_8 = arith.constant 0 : index
    %8 = vector.load %arg6[%c0_7, %c0_8] : memref<1x32xf32, #tpu.memory_space<vmem>>, vector<1x32xf32>
    %9 = vector.broadcast %8 : vector<1x32xf32> to vector<8x32xf32>
    %10 = arith.addf %7, %9 : vector<8x32xf32>
    %c0_9 = arith.constant 0 : index
    %c0_10 = arith.constant 0 : index
    %11 = vector.load %arg7[%c0_9, %c0_10] : memref<32x64xbf16, #tpu.memory_space<vmem>>, vector<32x64xbf16>
    %cst_11 = arith.constant dense<0.000000e+00> : vector<8x64xf32>
    %12 = tpu.matmul %2, %11, %cst_11 {dimension_numbers = #tpu.dot_dimension_numbers<[1], [0], [0], [1], [0, 0, 1, 1], [], []>} : vector<8x32xbf16>, vector<32x64xbf16>, vector<8x64xf32> -> vector<8x64xf32>
    %c0_12 = arith.constant 0 : index
    %c0_13 = arith.constant 0 : index
    %13 = vector.load %arg8[%c0_12, %c0_13] : memref<1x64xf32, #tpu.memory_space<vmem>>, vector<1x64xf32>
    %14 = vector.broadcast %13 : vector<1x64xf32> to vector<8x64xf32>
    %15 = arith.addf %12, %14 : vector<8x64xf32>
    %cst_14 = arith.constant 0.353553385 : f32
    %16 = vector.broadcast %cst_14 : f32 to vector<8x32xf32>
    %17 = arith.mulf %10, %16 : vector<8x32xf32>
    %18 = arith.truncf %17 : vector<8x32xf32> to vector<8x32xbf16>
    %19 = vector.extract_strided_slice %15 {offsets = [0, 0], sizes = [8, 32], strides = [1, 1]} : vector<8x64xf32> to vector<8x32xf32>
    %20 = arith.truncf %19 : vector<8x32xf32> to vector<8x32xbf16>
    %21 = vector.extract_strided_slice %15 {offsets = [0, 32], sizes = [8, 32], strides = [1, 1]} : vector<8x64xf32> to vector<8x32xf32>
    %22 = arith.truncf %21 : vector<8x32xf32> to vector<8x32xbf16>
    %c0_15 = arith.constant 0 : index
    %c0_16 = arith.constant 0 : index
    %c0_17 = arith.constant 0 : index
    %23 = vector.load %arg4[%c0_15, %c0_16, %c0_17] : memref<1x1x8xf32, #tpu.memory_space<vmem>>, vector<1x1x8xf32>
    %24 = vector.shape_cast %23 : vector<1x1x8xf32> to vector<1x8xf32>
    %25 = vector.shape_cast %24 : vector<1x8xf32> to vector<1x8xf32>
    %26 = vector.broadcast %25 : vector<1x8xf32> to vector<8x8xf32>
    %27 = vector.extract_strided_slice %18 {offsets = [0, 0], sizes = [8, 8], strides = [1, 1]} : vector<8x32xbf16> to vector<8x8xbf16>
    %28 = vector.extract_strided_slice %20 {offsets = [0, 0], sizes = [8, 8], strides = [1, 1]} : vector<8x32xbf16> to vector<8x8xbf16>
    %29 = vector.extract_strided_slice %22 {offsets = [0, 0], sizes = [8, 8], strides = [1, 1]} : vector<8x32xbf16> to vector<8x8xbf16>
    %cst_18 = arith.constant dense<0.000000e+00> : vector<8x8xf32>
    %30 = tpu.matmul %27, %28, %cst_18 {dimension_numbers = #tpu.dot_dimension_numbers<[1], [1], [0], [0], [0, 0, 1, 0], [], []>} : vector<8x8xbf16>, vector<8x8xbf16>, vector<8x8xf32> -> vector<8x8xf32>
    %31 = arith.addf %30, %26 : vector<8x8xf32>
    %cst_19 = arith.constant dense<0xFF800000> : vector<8xf32>
    %32 = vector.multi_reduction <maximumf>, %31, %cst_19 [1] : vector<8x8xf32> to vector<8xf32>
    %33 = vector.shape_cast %32 : vector<8xf32> to vector<8x1xf32>
    %34 = vector.broadcast %33 : vector<8x1xf32> to vector<8x8xf32>
    %35 = arith.subf %31, %34 : vector<8x8xf32>
    %36 = math.exp %35 : vector<8x8xf32>
    %cst_20 = arith.constant dense<0.000000e+00> : vector<8xf32>
    %37 = vector.multi_reduction <add>, %36, %cst_20 [1] : vector<8x8xf32> to vector<8xf32>
    %38 = vector.shape_cast %37 : vector<8xf32> to vector<8x1xf32>
    %39 = tpu.reciprocal %38 {approx = true} : vector<8x1xf32> -> vector<8x1xf32>
    %40 = vector.broadcast %39 : vector<8x1xf32> to vector<8x8xf32>
    %41 = arith.mulf %36, %40 : vector<8x8xf32>
    %42 = arith.truncf %41 : vector<8x8xf32> to vector<8x8xbf16>
    %cst_21 = arith.constant dense<0.000000e+00> : vector<8x8xf32>
    %43 = tpu.matmul %42, %29, %cst_21 {dimension_numbers = #tpu.dot_dimension_numbers<[1], [0], [0], [1], [0, 0, 1, 1], [], []>} : vector<8x8xbf16>, vector<8x8xbf16>, vector<8x8xf32> -> vector<8x8xf32>
    %c0_22 = arith.constant 0 : index
    %c0_23 = arith.constant 0 : index
    %44 = vector.load %arg20[%c0_22, %c0_23] : memref<8x32xf32, #tpu.memory_space<vmem>>, vector<8x8xf32>
    tpu.vector_store %arg20[%c0_22, %c0_23], %43 {strides = array<i32>} : memref<8x32xf32, #tpu.memory_space<vmem>>, vector<8x8xf32>,
    %45 = vector.extract_strided_slice %18 {offsets = [0, 8], sizes = [8, 8], strides = [1, 1]} : vector<8x32xbf16> to vector<8x8xbf16>
    %46 = vector.extract_strided_slice %20 {offsets = [0, 8], sizes = [8, 8], strides = [1, 1]} : vector<8x32xbf16> to vector<8x8xbf16>
    %47 = vector.extract_strided_slice %22 {offsets = [0, 8], sizes = [8, 8], strides = [1, 1]} : vector<8x32xbf16> to vector<8x8xbf16>
    %cst_24 = arith.constant dense<0.000000e+00> : vector<8x8xf32>
    %48 = tpu.matmul %45, %46, %cst_24 {dimension_numbers = #tpu.dot_dimension_numbers<[1], [1], [0], [0], [0, 0, 1, 0], [], []>} : vector<8x8xbf16>, vector<8x8xbf16>, vector<8x8xf32> -> vector<8x8xf32>
    %49 = arith.addf %48, %26 : vector<8x8xf32>
    %cst_25 = arith.constant dense<0xFF800000> : vector<8xf32>
    %50 = vector.multi_reduction <maximumf>, %49, %cst_25 [1] : vector<8x8xf32> to vector<8xf32>
    %51 = vector.shape_cast %50 : vector<8xf32> to vector<8x1xf32>
    %52 = vector.broadcast %51 : vector<8x1xf32> to vector<8x8xf32>
    %53 = arith.subf %49, %52 : vector<8x8xf32>
    %54 = math.exp %53 : vector<8x8xf32>
    %cst_26 = arith.constant dense<0.000000e+00> : vector<8xf32>
    %55 = vector.multi_reduction <add>, %54, %cst_26 [1] : vector<8x8xf32> to vector<8xf32>
    %56 = vector.shape_cast %55 : vector<8xf32> to vector<8x1xf32>
    %57 = tpu.reciprocal %56 {approx = true} : vector<8x1xf32> -> vector<8x1xf32>
    %58 = vector.broadcast %57 : vector<8x1xf32> to vector<8x8xf32>
    %59 = arith.mulf %54, %58 : vector<8x8xf32>
    %60 = arith.truncf %59 : vector<8x8xf32> to vector<8x8xbf16>
    %cst_27 = arith.constant dense<0.000000e+00> : vector<8x8xf32>
    %61 = tpu.matmul %60, %47, %cst_27 {dimension_numbers = #tpu.dot_dimension_numbers<[1], [0], [0], [1], [0, 0, 1, 1], [], []>} : vector<8x8xbf16>, vector<8x8xbf16>, vector<8x8xf32> -> vector<8x8xf32>
    %c0_28 = arith.constant 0 : index
    %c8 = arith.constant 8 : index
    %62 = vector.load %arg20[%c0_28, %c8] : memref<8x32xf32, #tpu.memory_space<vmem>>, vector<8x8xf32>
    tpu.vector_store %arg20[%c0_28, %c8], %61 {strides = array<i32>} : memref<8x32xf32, #tpu.memory_space<vmem>>, vector<8x8xf32>,
    %63 = vector.extract_strided_slice %18 {offsets = [0, 16], sizes = [8, 8], strides = [1, 1]} : vector<8x32xbf16> to vector<8x8xbf16>
    %64 = vector.extract_strided_slice %20 {offsets = [0, 16], sizes = [8, 8], strides = [1, 1]} : vector<8x32xbf16> to vector<8x8xbf16>
    %65 = vector.extract_strided_slice %22 {offsets = [0, 16], sizes = [8, 8], strides = [1, 1]} : vector<8x32xbf16> to vector<8x8xbf16>
    %cst_29 = arith.constant dense<0.000000e+00> : vector<8x8xf32>
    %66 = tpu.matmul %63, %64, %cst_29 {dimension_numbers = #tpu.dot_dimension_numbers<[1], [1], [0], [0], [0, 0, 1, 0], [], []>} : vector<8x8xbf16>, vector<8x8xbf16>, vector<8x8xf32> -> vector<8x8xf32>
    %67 = arith.addf %66, %26 : vector<8x8xf32>
    %cst_30 = arith.constant dense<0xFF800000> : vector<8xf32>
    %68 = vector.multi_reduction <maximumf>, %67, %cst_30 [1] : vector<8x8xf32> to vector<8xf32>
    %69 = vector.shape_cast %68 : vector<8xf32> to vector<8x1xf32>
    %70 = vector.broadcast %69 : vector<8x1xf32> to vector<8x8xf32>
    %71 = arith.subf %67, %70 : vector<8x8xf32>
    %72 = math.exp %71 : vector<8x8xf32>
    %cst_31 = arith.constant dense<0.000000e+00> : vector<8xf32>
    %73 = vector.multi_reduction <add>, %72, %cst_31 [1] : vector<8x8xf32> to vector<8xf32>
    %74 = vector.shape_cast %73 : vector<8xf32> to vector<8x1xf32>
    %75 = tpu.reciprocal %74 {approx = true} : vector<8x1xf32> -> vector<8x1xf32>
    %76 = vector.broadcast %75 : vector<8x1xf32> to vector<8x8xf32>
    %77 = arith.mulf %72, %76 : vector<8x8xf32>
    %78 = arith.truncf %77 : vector<8x8xf32> to vector<8x8xbf16>
    %cst_32 = arith.constant dense<0.000000e+00> : vector<8x8xf32>
    %79 = tpu.matmul %78, %65, %cst_32 {dimension_numbers = #tpu.dot_dimension_numbers<[1], [0], [0], [1], [0, 0, 1, 1], [], []>} : vector<8x8xbf16>, vector<8x8xbf16>, vector<8x8xf32> -> vector<8x8xf32>
    %c0_33 = arith.constant 0 : index
    %c16 = arith.constant 16 : index
    %80 = vector.load %arg20[%c0_33, %c16] : memref<8x32xf32, #tpu.memory_space<vmem>>, vector<8x8xf32>
    tpu.vector_store %arg20[%c0_33, %c16], %79 {strides = array<i32>} : memref<8x32xf32, #tpu.memory_space<vmem>>, vector<8x8xf32>,
    %81 = vector.extract_strided_slice %18 {offsets = [0, 24], sizes = [8, 8], strides = [1, 1]} : vector<8x32xbf16> to vector<8x8xbf16>
    %82 = vector.extract_strided_slice %20 {offsets = [0, 24], sizes = [8, 8], strides = [1, 1]} : vector<8x32xbf16> to vector<8x8xbf16>
    %83 = vector.extract_strided_slice %22 {offsets = [0, 24], sizes = [8, 8], strides = [1, 1]} : vector<8x32xbf16> to vector<8x8xbf16>
    %cst_34 = arith.constant dense<0.000000e+00> : vector<8x8xf32>
    %84 = tpu.matmul %81, %82, %cst_34 {dimension_numbers = #tpu.dot_dimension_numbers<[1], [1], [0], [0], [0, 0, 1, 0], [], []>} : vector<8x8xbf16>, vector<8x8xbf16>, vector<8x8xf32> -> vector<8x8xf32>
    %85 = arith.addf %84, %26 : vector<8x8xf32>
    %cst_35 = arith.constant dense<0xFF800000> : vector<8xf32>
    %86 = vector.multi_reduction <maximumf>, %85, %cst_35 [1] : vector<8x8xf32> to vector<8xf32>
    %87 = vector.shape_cast %86 : vector<8xf32> to vector<8x1xf32>
    %88 = vector.broadcast %87 : vector<8x1xf32> to vector<8x8xf32>
    %89 = arith.subf %85, %88 : vector<8x8xf32>
    %90 = math.exp %89 : vector<8x8xf32>
    %cst_36 = arith.constant dense<0.000000e+00> : vector<8xf32>
    %91 = vector.multi_reduction <add>, %90, %cst_36 [1] : vector<8x8xf32> to vector<8xf32>
    %92 = vector.shape_cast %91 : vector<8xf32> to vector<8x1xf32>
    %93 = tpu.reciprocal %92 {approx = true} : vector<8x1xf32> -> vector<8x1xf32>
    %94 = vector.broadcast %93 : vector<8x1xf32> to vector<8x8xf32>
    %95 = arith.mulf %90, %94 : vector<8x8xf32>
    %96 = arith.truncf %95 : vector<8x8xf32> to vector<8x8xbf16>
    %cst_37 = arith.constant dense<0.000000e+00> : vector<8x8xf32>
    %97 = tpu.matmul %96, %83, %cst_37 {dimension_numbers = #tpu.dot_dimension_numbers<[1], [0], [0], [1], [0, 0, 1, 1], [], []>} : vector<8x8xbf16>, vector<8x8xbf16>, vector<8x8xf32> -> vector<8x8xf32>
    %c0_38 = arith.constant 0 : index
    %c24 = arith.constant 24 : index
    %98 = vector.load %arg20[%c0_38, %c24] : memref<8x32xf32, #tpu.memory_space<vmem>>, vector<8x8xf32>
    tpu.vector_store %arg20[%c0_38, %c24], %97 {strides = array<i32>} : memref<8x32xf32, #tpu.memory_space<vmem>>, vector<8x8xf32>,
    %c0_39 = arith.constant 0 : index
    %c0_40 = arith.constant 0 : index
    %99 = vector.load %arg20[%c0_39, %c0_40] : memref<8x32xf32, #tpu.memory_space<vmem>>, vector<8x32xf32>
    %100 = arith.truncf %99 : vector<8x32xf32> to vector<8x32xbf16>
    %c0_41 = arith.constant 0 : index
    %c0_42 = arith.constant 0 : index
    %101 = vector.load %arg9[%c0_41, %c0_42] : memref<32x32xbf16, #tpu.memory_space<vmem>>, vector<32x32xbf16>
    %cst_43 = arith.constant dense<0.000000e+00> : vector<8x32xf32>
    %102 = tpu.matmul %100, %101, %cst_43 {dimension_numbers = #tpu.dot_dimension_numbers<[1], [0], [0], [1], [0, 0, 1, 1], [], []>} : vector<8x32xbf16>, vector<32x32xbf16>, vector<8x32xf32> -> vector<8x32xf32>
    %c0_44 = arith.constant 0 : index
    %c0_45 = arith.constant 0 : index
    %103 = vector.load %arg10[%c0_44, %c0_45] : memref<1x32xf32, #tpu.memory_space<vmem>>, vector<1x32xf32>
    %104 = vector.broadcast %103 : vector<1x32xf32> to vector<8x32xf32>
    %105 = arith.addf %102, %104 : vector<8x32xf32>
    %106 = arith.addf %4, %105 : vector<8x32xf32>
    %c0_46 = arith.constant 0 : index
    %c0_47 = arith.constant 0 : index
    %107 = vector.load %arg11[%c0_46, %c0_47] : memref<1x32xf32, #tpu.memory_space<vmem>>, vector<1x32xf32>
    %c0_48 = arith.constant 0 : index
    %c0_49 = arith.constant 0 : index
    %108 = vector.load %arg12[%c0_48, %c0_49] : memref<1x32xf32, #tpu.memory_space<vmem>>, vector<1x32xf32>
    %cst_50 = arith.constant dense<0.000000e+00> : vector<8xf32>
    %109 = vector.multi_reduction <add>, %106, %cst_50 [1] : vector<8x32xf32> to vector<8xf32>
    %110 = vector.shape_cast %109 : vector<8xf32> to vector<8x1xf32>
    %cst_51 = arith.constant 3.200000e+01 : f32
    %111 = vector.broadcast %cst_51 : f32 to vector<8x1xf32>
    %112 = arith.divf %110, %111 : vector<8x1xf32>
    %113 = vector.broadcast %112 : vector<8x1xf32> to vector<8x32xf32>
    %114 = arith.subf %106, %113 : vector<8x32xf32>
    %115 = arith.mulf %114, %114 : vector<8x32xf32>
    %cst_52 = arith.constant dense<0.000000e+00> : vector<8xf32>
    %116 = vector.multi_reduction <add>, %115, %cst_52 [1] : vector<8x32xf32> to vector<8xf32>
    %117 = vector.shape_cast %116 : vector<8xf32> to vector<8x1xf32>
    %cst_53 = arith.constant 3.200000e+01 : f32
    %118 = vector.broadcast %cst_53 : f32 to vector<8x1xf32>
    %119 = arith.divf %117, %118 : vector<8x1xf32>
    %cst_54 = arith.constant 9.99999996E-13 : f32
    %120 = vector.broadcast %cst_54 : f32 to vector<8x1xf32>
    %121 = arith.addf %119, %120 : vector<8x1xf32>
    %122 = math.rsqrt %121 : vector<8x1xf32>
    %123 = vector.broadcast %122 : vector<8x1xf32> to vector<8x32xf32>
    %124 = arith.mulf %114, %123 : vector<8x32xf32>
    %125 = vector.broadcast %107 : vector<1x32xf32> to vector<8x32xf32>
    %126 = arith.mulf %124, %125 : vector<8x32xf32>
    %127 = vector.broadcast %108 : vector<1x32xf32> to vector<8x32xf32>
    %128 = arith.addf %126, %127 : vector<8x32xf32>
    %129 = arith.truncf %128 : vector<8x32xf32> to vector<8x32xbf16>
    %c0_55 = arith.constant 0 : index
    %c0_56 = arith.constant 0 : index
    %130 = vector.load %arg13[%c0_55, %c0_56] : memref<32x64xbf16, #tpu.memory_space<vmem>>, vector<32x64xbf16>
    %cst_57 = arith.constant dense<0.000000e+00> : vector<8x64xf32>
    %131 = tpu.matmul %129, %130, %cst_57 {dimension_numbers = #tpu.dot_dimension_numbers<[1], [0], [0], [1], [0, 0, 1, 1], [], []>} : vector<8x32xbf16>, vector<32x64xbf16>, vector<8x64xf32> -> vector<8x64xf32>
    %c0_58 = arith.constant 0 : index
    %c0_59 = arith.constant 0 : index
    %132 = vector.load %arg14[%c0_58, %c0_59] : memref<1x64xf32, #tpu.memory_space<vmem>>, vector<1x64xf32>
    %133 = vector.broadcast %132 : vector<1x64xf32> to vector<8x64xf32>
    %134 = arith.addf %131, %133 : vector<8x64xf32>
    %cst_60 = arith.constant 0.707106769 : f32
    %135 = vector.broadcast %cst_60 : f32 to vector<8x64xf32>
    %136 = arith.mulf %134, %135 : vector<8x64xf32>
    %137 = math.absf %136 : vector<8x64xf32>
    %cst_61 = arith.constant 0.327591091 : f32
    %138 = vector.broadcast %cst_61 : f32 to vector<8x64xf32>
    %139 = arith.mulf %138, %137 : vector<8x64xf32>
    %cst_62 = arith.constant 1.000000e+00 : f32
    %140 = vector.broadcast %cst_62 : f32 to vector<8x64xf32>
    %141 = arith.addf %140, %139 : vector<8x64xf32>
    %cst_63 = arith.constant 1.000000e+00 : f32
    %142 = vector.broadcast %cst_63 : f32 to vector<8x64xf32>
    %143 = arith.divf %142, %141 : vector<8x64xf32>
    %cst_64 = arith.constant 1.06140542 : f32
    %144 = vector.broadcast %cst_64 : f32 to vector<8x64xf32>
    %145 = arith.mulf %144, %143 : vector<8x64xf32>
    %cst_65 = arith.constant 1.45315206 : f32
    %146 = vector.broadcast %cst_65 : f32 to vector<8x64xf32>
    %147 = arith.subf %145, %146 : vector<8x64xf32>
    %148 = arith.mulf %147, %143 : vector<8x64xf32>
    %cst_66 = arith.constant 1.42141378 : f32
    %149 = vector.broadcast %cst_66 : f32 to vector<8x64xf32>
    %150 = arith.addf %148, %149 : vector<8x64xf32>
    %151 = arith.mulf %150, %143 : vector<8x64xf32>
    %cst_67 = arith.constant 0.284496725 : f32
    %152 = vector.broadcast %cst_67 : f32 to vector<8x64xf32>
    %153 = arith.subf %151, %152 : vector<8x64xf32>
    %154 = arith.mulf %153, %143 : vector<8x64xf32>
    %cst_68 = arith.constant 0.254829586 : f32
    %155 = vector.broadcast %cst_68 : f32 to vector<8x64xf32>
    %156 = arith.addf %154, %155 : vector<8x64xf32>
    %157 = arith.mulf %156, %143 : vector<8x64xf32>
    %cst_69 = arith.constant 0.000000e+00 : f32
    %158 = vector.broadcast %cst_69 : f32 to vector<8x64xf32>
    %159 = arith.subf %158, %137 : vector<8x64xf32>
    %160 = arith.mulf %159, %137 : vector<8x64xf32>
    %161 = math.exp %160 : vector<8x64xf32>
    %162 = arith.mulf %157, %161 : vector<8x64xf32>
    %cst_70 = arith.constant 1.000000e+00 : f32
    %163 = vector.broadcast %cst_70 : f32 to vector<8x64xf32>
    %164 = arith.subf %163, %162 : vector<8x64xf32>
    %cst_71 = arith.constant 0.000000e+00 : f32
    %165 = vector.broadcast %cst_71 : f32 to vector<8x64xf32>
    %166 = arith.cmpf olt, %136, %165 : vector<8x64xf32>
    %cst_72 = arith.constant 0.000000e+00 : f32
    %167 = vector.broadcast %cst_72 : f32 to vector<8x64xf32>
    %168 = arith.subf %167, %164 : vector<8x64xf32>
    %169 = arith.select %166, %168, %164 : vector<8x64xi1>, vector<8x64xf32>
    %cst_73 = arith.constant 5.000000e-01 : f32
    %170 = vector.broadcast %cst_73 : f32 to vector<8x64xf32>
    %171 = arith.mulf %134, %170 : vector<8x64xf32>
    %cst_74 = arith.constant 1.000000e+00 : f32
    %172 = vector.broadcast %cst_74 : f32 to vector<8x64xf32>
    %173 = arith.addf %172, %169 : vector<8x64xf32>
    %174 = arith.mulf %171, %173 : vector<8x64xf32>
    %175 = arith.truncf %174 : vector<8x64xf32> to vector<8x64xbf16>
    %c0_75 = arith.constant 0 : index
    %c0_76 = arith.constant 0 : index
    %176 = vector.load %arg15[%c0_75, %c0_76] : memref<64x32xbf16, #tpu.memory_space<vmem>>, vector<64x32xbf16>
    %cst_77 = arith.constant dense<0.000000e+00> : vector<8x32xf32>
    %177 = tpu.matmul %175, %176, %cst_77 {dimension_numbers = #tpu.dot_dimension_numbers<[1], [0], [0], [1], [0, 0, 1, 1], [], []>} : vector<8x64xbf16>, vector<64x32xbf16>, vector<8x32xf32> -> vector<8x32xf32>
    %c0_78 = arith.constant 0 : index
    %c0_79 = arith.constant 0 : index
    %178 = vector.load %arg16[%c0_78, %c0_79] : memref<1x32xf32, #tpu.memory_space<vmem>>, vector<1x32xf32>
    %179 = vector.broadcast %178 : vector<1x32xf32> to vector<8x32xf32>
    %180 = arith.addf %177, %179 : vector<8x32xf32>
    %181 = arith.addf %180, %128 : vector<8x32xf32>
    %c0_80 = arith.constant 0 : index
    %c0_81 = arith.constant 0 : index
    %182 = vector.load %arg17[%c0_80, %c0_81] : memref<1x32xf32, #tpu.memory_space<vmem>>, vector<1x32xf32>
    %c0_82 = arith.constant 0 : index
    %c0_83 = arith.constant 0 : index
    %183 = vector.load %arg18[%c0_82, %c0_83] : memref<1x32xf32, #tpu.memory_space<vmem>>, vector<1x32xf32>
    %cst_84 = arith.constant dense<0.000000e+00> : vector<8xf32>
    %184 = vector.multi_reduction <add>, %181, %cst_84 [1] : vector<8x32xf32> to vector<8xf32>
    %185 = vector.shape_cast %184 : vector<8xf32> to vector<8x1xf32>
    %cst_85 = arith.constant 3.200000e+01 : f32
    %186 = vector.broadcast %cst_85 : f32 to vector<8x1xf32>
    %187 = arith.divf %185, %186 : vector<8x1xf32>
    %188 = vector.broadcast %187 : vector<8x1xf32> to vector<8x32xf32>
    %189 = arith.subf %181, %188 : vector<8x32xf32>
    %190 = arith.mulf %189, %189 : vector<8x32xf32>
    %cst_86 = arith.constant dense<0.000000e+00> : vector<8xf32>
    %191 = vector.multi_reduction <add>, %190, %cst_86 [1] : vector<8x32xf32> to vector<8xf32>
    %192 = vector.shape_cast %191 : vector<8xf32> to vector<8x1xf32>
    %cst_87 = arith.constant 3.200000e+01 : f32
    %193 = vector.broadcast %cst_87 : f32 to vector<8x1xf32>
    %194 = arith.divf %192, %193 : vector<8x1xf32>
    %cst_88 = arith.constant 9.99999996E-13 : f32
    %195 = vector.broadcast %cst_88 : f32 to vector<8x1xf32>
    %196 = arith.addf %194, %195 : vector<8x1xf32>
    %197 = math.rsqrt %196 : vector<8x1xf32>
    %198 = vector.broadcast %197 : vector<8x1xf32> to vector<8x32xf32>
    %199 = arith.mulf %189, %198 : vector<8x32xf32>
    %200 = vector.broadcast %182 : vector<1x32xf32> to vector<8x32xf32>
    %201 = arith.mulf %199, %200 : vector<8x32xf32>
    %202 = vector.broadcast %183 : vector<1x32xf32> to vector<8x32xf32>
    %203 = arith.addf %201, %202 : vector<8x32xf32>
    %c0_89 = arith.constant 0 : index
    %c0_90 = arith.constant 0 : index
    %c0_91 = arith.constant 0 : index
    %204 = vector.load %arg19[%c0_89, %c0_90, %c0_91] : memref<1x8x32xf32, #tpu.memory_space<vmem>>, vector<1x8x32xf32>
    %205 = vector.shape_cast %204 : vector<1x8x32xf32> to vector<8x32xf32>
    %206 = vector.shape_cast %203 : vector<8x32xf32> to vector<1x8x32xf32>
    tpu.vector_store %arg19[%c0_89, %c0_90, %c0_91], %206 {strides = array<i32>} : memref<1x8x32xf32, #tpu.memory_space<vmem>>, vector<1x8x32xf32>,
    return
  }
  func.func @transform_0(%arg0: i32, %arg1: i32) -> (i32, i32, i32) {
    %c0_i32 = arith.constant 0 : i32
    %c0_i32_0 = arith.constant 0 : i32
    %c0_i32_1 = arith.constant 0 : i32
    return %arg0, %c0_i32, %c0_i32_0 : i32, i32, i32
  }
  func.func @transform_1(%arg0: i32, %arg1: i32) -> (i32, i32, i32) {
    %c0_i32 = arith.constant 0 : i32
    %c0_i32_0 = arith.constant 0 : i32
    return %arg0, %arg1, %c0_i32 : i32, i32, i32
  }
  func.func @transform_2(%arg0: i32, %arg1: i32) -> (i32, i32, i32) {
    %c0_i32 = arith.constant 0 : i32
    %c0_i32_0 = arith.constant 0 : i32
    %c0_i32_1 = arith.constant 0 : i32
    return %arg0, %c0_i32, %c0_i32_0 : i32, i32, i32
  }
  func.func @transform_3(%arg0: i32, %arg1: i32) -> (i32, i32) {
    %c0_i32 = arith.constant 0 : i32
    %c0_i32_0 = arith.constant 0 : i32
    %c0_i32_1 = arith.constant 0 : i32
    return %c0_i32, %c0_i32_0 : i32, i32
  }
  func.func @transform_4(%arg0: i32, %arg1: i32) -> (i32, i32) {
    %c0_i32 = arith.constant 0 : i32
    %c0_i32_0 = arith.constant 0 : i32
    %c0_i32_1 = arith.constant 0 : i32
    return %c0_i32, %c0_i32_0 : i32, i32
  }
  func.func @transform_5(%arg0: i32, %arg1: i32) -> (i32, i32) {
    %c0_i32 = arith.constant 0 : i32
    %c0_i32_0 = arith.constant 0 : i32
    %c0_i32_1 = arith.constant 0 : i32
    return %c0_i32, %c0_i32_0 : i32, i32
  }
  func.func @transform_6(%arg0: i32, %arg1: i32) -> (i32, i32) {
    %c0_i32 = arith.constant 0 : i32
    %c0_i32_0 = arith.constant 0 : i32
    %c0_i32_1 = arith.constant 0 : i32
    return %c0_i32, %c0_i32_0 : i32, i32
  }
  func.func @transform_7(%arg0: i32, %arg1: i32) -> (i32, i32) {
    %c0_i32 = arith.constant 0 : i32
    %c0_i32_0 = arith.constant 0 : i32
    %c0_i32_1 = arith.constant 0 : i32
    return %c0_i32, %c0_i32_0 : i32, i32
  }
  func.func @transform_8(%arg0: i32, %arg1: i32) -> (i32, i32) {
    %c0_i32 = arith.constant 0 : i32
    %c0_i32_0 = arith.constant 0 : i32
    %c0_i32_1 = arith.constant 0 : i32
    return %c0_i32, %c0_i32_0 : i32, i32
  }
  func.func @transform_9(%arg0: i32, %arg1: i32) -> (i32, i32) {
    %c0_i32 = arith.constant 0 : i32
    %c0_i32_0 = arith.constant 0 : i32
    %c0_i32_1 = arith.constant 0 : i32
    return %c0_i32, %c0_i32_0 : i32, i32
  }
  func.func @transform_10(%arg0: i32, %arg1: i32) -> (i32, i32) {
    %c0_i32 = arith.constant 0 : i32
    %c0_i32_0 = arith.constant 0 : i32
    %c0_i32_1 = arith.constant 0 : i32
    return %c0_i32, %c0_i32_0 : i32, i32
  }
  func.func @transform_11(%arg0: i32, %arg1: i32) -> (i32, i32) {
    %c0_i32 = arith.constant 0 : i32
    %c0_i32_0 = arith.constant 0 : i32
    %c0_i32_1 = arith.constant 0 : i32
    return %c0_i32, %c0_i32_0 : i32, i32
  }
  func.func @transform_12(%arg0: i32, %arg1: i32) -> (i32, i32) {
    %c0_i32 = arith.constant 0 : i32
    %c0_i32_0 = arith.constant 0 : i32
    %c0_i32_1 = arith.constant 0 : i32
    return %c0_i32, %c0_i32_0 : i32, i32
  }
  func.func @transform_13(%arg0: i32, %arg1: i32) -> (i32, i32) {
    %c0_i32 = arith.constant 0 : i32
    %c0_i32_0 = arith.constant 0 : i32
    %c0_i32_1 = arith.constant 0 : i32
    return %c0_i32, %c0_i32_0 : i32, i32
  }
  func.func @transform_14(%arg0: i32, %arg1: i32) -> (i32, i32) {
    %c0_i32 = arith.constant 0 : i32
    %c0_i32_0 = arith.constant 0 : i32
    %c0_i32_1 = arith.constant 0 : i32
    return %c0_i32, %c0_i32_0 : i32, i32
  }
  func.func @transform_15(%arg0: i32, %arg1: i32) -> (i32, i32) {
    %c0_i32 = arith.constant 0 : i32
    %c0_i32_0 = arith.constant 0 : i32
    %c0_i32_1 = arith.constant 0 : i32
    return %c0_i32, %c0_i32_0 : i32, i32
  }
  func.func @transform_16(%arg0: i32, %arg1: i32) -> (i32, i32) {
    %c0_i32 = arith.constant 0 : i32
    %c0_i32_0 = arith.constant 0 : i32
    %c0_i32_1 = arith.constant 0 : i32
    return %c0_i32, %c0_i32_0 : i32, i32
  }
  func.func @transform_17(%arg0: i32, %arg1: i32) -> (i32, i32, i32) {
    %c0_i32 = arith.constant 0 : i32
    %c0_i32_0 = arith.constant 0 : i32
    return %arg0, %arg1, %c0_i32 : i32, i32, i32
  }
}

</mosaic_0001>

<llo_original>
// kernel: tpu_custom_call.1
$region0: #{tpu_custom_call.1}
  #allocation0 [shape = 'u32[]', space=smem, size = 0x4, offset = 0x4, fixed_abs, tag = 'smem constant byte address 0x4 - core index']
  #allocation1 [shape = 'u32[144,128]{1,0:T(1,128)}', space=vmem, size = 0x12000, scoped, tag = 'internal scratch']
  #allocation2 [shape = 'f32[8,32]{1,0:T(8,128)}', space=vmem, size = 0x1000, scoped, tag = 'scratch operand']
  %s0 = inlined_call_operand.hbm [shape: f32[2,8,32], index: 0, kind: input, shape index: {}]
  %s1 = inlined_call_operand.hbm [shape: f32[2,8,32], index: 1, kind: input, shape index: {}]
  %s2 = inlined_call_operand.hbm [shape: f32[2,1,8], index: 2, kind: input, shape index: {}]
  %s3 = inlined_call_operand.hbm [shape: bf16[32,32], index: 3, kind: input, shape index: {}]
  %s4 = inlined_call_operand.hbm [shape: f32[1,32], index: 4, kind: input, shape index: {}]
  %s5 = inlined_call_operand.hbm [shape: bf16[32,64], index: 5, kind: input, shape index: {}]
  %s6 = inlined_call_operand.hbm [shape: f32[1,64], index: 6, kind: input, shape index: {}]
  %s7 = inlined_call_operand.hbm [shape: bf16[32,32], index: 7, kind: input, shape index: {}]
  %s8 = inlined_call_operand.hbm [shape: f32[1,32], index: 8, kind: input, shape index: {}]
  %s9 = inlined_call_operand.hbm [shape: f32[1,32], index: 9, kind: input, shape index: {}]
  %s10 = inlined_call_operand.hbm [shape: f32[1,32], index: 10, kind: input, shape index: {}]
  %s11 = inlined_call_operand.hbm [shape: bf16[32,64], index: 11, kind: input, shape index: {}]
  %s12 = inlined_call_operand.hbm [shape: f32[1,64], index: 12, kind: input, shape index: {}]
  %s13 = inlined_call_operand.hbm [shape: bf16[64,32], index: 13, kind: input, shape index: {}]
  %s14 = inlined_call_operand.hbm [shape: f32[1,32], index: 14, kind: input, shape index: {}]
  %s15 = inlined_call_operand.hbm [shape: f32[1,32], index: 15, kind: input, shape index: {}]
  %s16 = inlined_call_operand.hbm [shape: f32[1,32], index: 16, kind: input, shape index: {}]
  %s17 = inlined_call_operand.hbm [shape: f32[2,8,32], index: 17, kind: output, shape index: {}]
  %s18 = sld [smem:[#allocation0]]
  $region169: #{tpu_custom_call.1} parent=0
    _
  %s20 = ssub.s32 1, %s18
  %s21 = scalar_select 0, %s20, %s18
  $region1: #{tpu_custom_call.1} parent=0
    #allocation3 [shape = 'u8[8192]{0}', space=vmem, size = 0x2000, scoped, tag = 'input window, operand 0']
    #allocation4 [shape = 's32[2]{0}', space=sflag, size = 0x8, scoped, tag = 'scoped memory for tpu_custom_call.1']
    #allocation5 [shape = 's32[2]{0}', space=sflag, size = 0x8, scoped, tag = 'scoped memory for tpu_custom_call.1']
    #allocation6 [shape = 'u8[8192]{0}', space=vmem, size = 0x2000, scoped, tag = 'input window, operand 1']
    #allocation7 [shape = 's32[2]{0}', space=sflag, size = 0x8, scoped, tag = 'scoped memory for tpu_custom_call.1']
    #allocation8 [shape = 'u8[1024]{0}', space=vmem, size = 0x400, scoped, tag = 'input window, operand 2']
    #allocation9 [shape = 'u8[8192]{0}', space=vmem, size = 0x2000, scoped, tag = 'input window, operand 3, single buffered']
    #allocation10 [shape = 's32[1]{0}', space=sflag, size = 0x4, scoped, tag = 'scoped memory for tpu_custom_call.1']
    #allocation11 [shape = 'u8[512]{0}', space=vmem, size = 0x400, scoped, tag = 'input window, operand 4, single buffered']
    #allocation12 [shape = 'u8[8192]{0}', space=vmem, size = 0x2000, scoped, tag = 'input window, operand 5, single buffered']
    #allocation13 [shape = 's32[1]{0}', space=sflag, size = 0x4, scoped, tag = 'scoped memory for tpu_custom_call.1']
    #allocation14 [shape = 'u8[512]{0}', space=vmem, size = 0x400, scoped, tag = 'input window, operand 6, single buffered']
    #allocation15 [shape = 'u8[8192]{0}', space=vmem, size = 0x2000, scoped, tag = 'input window, operand 7, single buffered']
    #allocation16 [shape = 's32[1]{0}', space=sflag, size = 0x4, scoped, tag = 'scoped memory for tpu_custom_call.1']
    #allocation17 [shape = 'u8[512]{0}', space=vmem, size = 0x400, scoped, tag = 'input window, operand 8, single buffered']
    #allocation18 [shape = 'u8[512]{0}', space=vmem, size = 0x400, scoped, tag = 'input window, operand 9, single buffered']
    #allocation19 [shape = 's32[1]{0}', space=sflag, size = 0x4, scoped, tag = 'scoped memory for tpu_custom_call.1']
    #allocation20 [shape = 'u8[512]{0}', space=vmem, size = 0x400, scoped, tag = 'input window, operand 10, single buffered']
    #allocation21 [shape = 'u8[8192]{0}', space=vmem, size = 0x2000, scoped, tag = 'input window, operand 11, single buffered']
    #allocation22 [shape = 's32[1]{0}', space=sflag, size = 0x4, scoped, tag = 'scoped memory for tpu_custom_call.1']
    #allocation23 [shape = 'u8[512]{0}', space=vmem, size = 0x400, scoped, tag = 'input window, operand 12, single buffered']
    #allocation24 [shape = 'u8[16384]{0}', space=vmem, size = 0x4000, scoped, tag = 'input window, operand 13, single buffered']
    #allocation25 [shape = 's32[1]{0}', space=sflag, size = 0x4, scoped, tag = 'scoped memory for tpu_custom_call.1']
    #allocation26 [shape = 'u8[512]{0}', space=vmem, size = 0x400, scoped, tag = 'input window, operand 14, single buffered']
    #allocation27 [shape = 'u8[512]{0}', space=vmem, size = 0x400, scoped, tag = 'input window, operand 15, single buffered']
    #allocation28 [shape = 's32[1]{0}', space=sflag, size = 0x4, scoped, tag = 'scoped memory for tpu_custom_call.1']
    #allocation29 [shape = 'u8[512]{0}', space=vmem, size = 0x400, scoped, tag = 'input window, operand 16, single buffered']
    #allocation30 [shape = 'u8[8192]{0}', space=vmem, size = 0x2000, scoped, tag = 'output window, operand 0']
    %22 = vsyncpa [#allocation4], 0
    %s23 = scalar_lea.sflag [#allocation4], 1
    %24 = vsyncpa %s23, 0
    %25 = vsyncpa [#allocation7], 0
    %s26 = scalar_lea.sflag [#allocation7], 1
    %27 = vsyncpa %s26, 0
    %28 = vsyncpa [#allocation10], 0
    %29 = vsyncpa [#allocation13], 0
    %30 = vsyncpa [#allocation16], 0
    %31 = vsyncpa [#allocation19], 0
    %32 = vsyncpa [#allocation22], 0
    %33 = vsyncpa [#allocation25], 0
    %34 = vsyncpa [#allocation28], 0
    %35 = vsyncpa [#allocation5], 0
    %s36 = scalar_lea.sflag [#allocation5], 1
    %37 = vsyncpa %s36, 0
    loop: start=0, step=1, limit=4
    $region2: #{tpu_custom_call.1} parent=1 // loop_pre_header
      _
    $region3: #{tpu_custom_call.1} parent=1 // loop_header
      %s39 = sphi 0, %s43
      %p40 = scmp.ge.s32.totalorder %s39, 4
      %s46 = sphi 0, %s58
      %s47 = sphi 0, %s54
      %s48 = sphi 0, %s46
      %s49 = sphi 0, %s47
      %s50 = sphi 0, %s48
      %s51 = sphi 0, %s49
      %s61 = sphi 0, %s63
      %s64 = sphi 0, %s61
      %s65 = sphi 0, %s64
      %s81 = sphi 0, %s65
      %s89 = sphi 0, %s91
      %s92 = sphi 0, %s89
      %s93 = sphi 0, %s92
      %s109 = sphi 0, %s93
      %s115 = sphi 0, %s117
      %s118 = sphi 0, %s115
      %s119 = sphi 0, %s118
      %s135 = sphi 0, %s119
      %s139 = sphi 0, %s139
      %s141 = sphi 0, %s139
      %s142 = sphi 0, %s141
      %s156 = sphi 0, %s142
      %s160 = sphi 0, %s160
      %s162 = sphi 0, %s160
      %s163 = sphi 0, %s162
      %s177 = sphi 0, %s163
      %s181 = sphi 0, %s181
      %s183 = sphi 0, %s181
      %s184 = sphi 0, %s183
      %s198 = sphi 0, %s184
      %s202 = sphi 0, %s202
      %s204 = sphi 0, %s202
      %s205 = sphi 0, %s204
      %s219 = sphi 0, %s205
      %s223 = sphi 0, %s223
      %s225 = sphi 0, %s223
      %s226 = sphi 0, %s225
      %s240 = sphi 0, %s226
      %s244 = sphi 0, %s244
      %s246 = sphi 0, %s244
      %s247 = sphi 0, %s246
      %s261 = sphi 0, %s247
      %s265 = sphi 0, %s265
      %s267 = sphi 0, %s265
      %s268 = sphi 0, %s267
      %s282 = sphi 0, %s268
      %s286 = sphi 0, %s286
      %s288 = sphi 0, %s286
      %s289 = sphi 0, %s288
      %s303 = sphi 0, %s289
      %s307 = sphi 0, %s307
      %s309 = sphi 0, %s307
      %s310 = sphi 0, %s309
      %s324 = sphi 0, %s310
      %s328 = sphi 0, %s328
      %s330 = sphi 0, %s328
      %s331 = sphi 0, %s330
      %s345 = sphi 0, %s331
      %s349 = sphi 0, %s349
      %s351 = sphi 0, %s349
      %s352 = sphi 0, %s351
      %s366 = sphi 0, %s352
      %s370 = sphi 0, %s370
      %s372 = sphi 0, %s370
      %s373 = sphi 0, %s372
      %s387 = sphi 0, %s373
      %s391 = sphi 0, %s391
      %s393 = sphi 0, %s391
      %s394 = sphi 0, %s393
      %s408 = sphi 0, %s394
      %s412 = sphi 0, %s412
      %s414 = sphi 0, %s412
      %s415 = sphi 0, %s414
      %s429 = sphi 0, %s415
      %s437 = sphi 0, %s439
      %s440 = sphi 0, %s437
      %s441 = sphi 0, %s440
      %s457 = sphi 0, %s441
    $region4: #{tpu_custom_call.1} parent=1 // loop_header_branch
      %42 = sbr.rel (%p40) target = $region8
    $region5: #{tpu_custom_call.1} parent=1 // loop_body
      %s44 = ssub.s32 %s39, 1
      %s45 = ssub.s32 %s39, 2
      %s52 = sadd.s32 1, %s47
      %p53 = scmp.ge.s32.totalorder %s52, 1
      %s54 = scalar_select %p53, 0, %s52
      %s55 = sadd.s32 1, %s46
      %s56 = scalar_select %p53, %s55, %s46
      %p57 = scmp.ge.s32.totalorder %s56, 2
      %s58 = scalar_select %p57, 0, %s56
      %s59 = ssub.s32 %s46, %s58
      %p60 = scmp.eq.s32.totalorder %s59, 0
      %s62 = sadd.s32 %s61, 1
      %s63 = scalar_select %p60, %s61, %s62
      %p66 = pneg %p60
      %p67 = scmp.eq.s32.totalorder %s39, 1
      %p68 = por %p66, %p67
      %p69 = scmp.ne.s32.totalorder %s61, %s64
      %p70 = scmp.eq.s32.totalorder %s39, 0
      %p71 = por %p69, %p70
      %p72 = scmp.ne.s32.totalorder %s61, %s64
      %p73 = scmp.eq.s32.totalorder %s44, 1
      %p74 = por %p72, %p73
      %p75 = scmp.ne.s32.totalorder %s64, %s65
      %p76 = scmp.eq.s32.totalorder %s44, 0
      %p77 = por %p75, %p76
      %p78 = scmp.ne.s32.totalorder %s64, %s65
      %p79 = scmp.eq.s32.totalorder %s45, 1
      %p80 = por %p78, %p79
      %p82 = scmp.ne.s32.totalorder %s65, %s81
      %p83 = scmp.eq.s32.totalorder %s45, 0
      %p84 = por %p82, %p83
      %s85 = ssub.s32 %s46, %s58
      %s86 = ssub.s32 %s47, %s54
      %s87 = sor.u32 %s85, %s86
      %p88 = scmp.eq.s32.totalorder %s87, 0
      %s90 = sadd.s32 %s89, 1
      %s91 = scalar_select %p88, %s89, %s90
      %p94 = pneg %p88
      %p95 = scmp.eq.s32.totalorder %s39, 1
      %p96 = por %p94, %p95
      %p97 = scmp.ne.s32.totalorder %s89, %s92
      %p98 = scmp.eq.s32.totalorder %s39, 0
      %p99 = por %p97, %p98
      %p100 = scmp.ne.s32.totalorder %s89, %s92
      %p101 = scmp.eq.s32.totalorder %s44, 1
      %p102 = por %p100, %p101
      %p103 = scmp.ne.s32.totalorder %s92, %s93
      %p104 = scmp.eq.s32.totalorder %s44, 0
      %p105 = por %p103, %p104
      %p106 = scmp.ne.s32.totalorder %s92, %s93
      %p107 = scmp.eq.s32.totalorder %s45, 1
      %p108 = por %p106, %p107
      %p110 = scmp.ne.s32.totalorder %s93, %s109
      %p111 = scmp.eq.s32.totalorder %s45, 0
      %p112 = por %p110, %p111
      %s113 = ssub.s32 %s46, %s58
      %p114 = scmp.eq.s32.totalorder %s113, 0
      %s116 = sadd.s32 %s115, 1
      %s117 = scalar_select %p114, %s115, %s116
      %p120 = pneg %p114
      %p121 = scmp.eq.s32.totalorder %s39, 1
      %p122 = por %p120, %p121
      %p123 = scmp.ne.s32.totalorder %s115, %s118
      %p124 = scmp.eq.s32.totalorder %s39, 0
      %p125 = por %p123, %p124
      %p126 = scmp.ne.s32.totalorder %s115, %s118
      %p127 = scmp.eq.s32.totalorder %s44, 1
      %p128 = por %p126, %p127
      %p129 = scmp.ne.s32.totalorder %s118, %s119
      %p130 = scmp.eq.s32.totalorder %s44, 0
      %p131 = por %p129, %p130
      %p132 = scmp.ne.s32.totalorder %s118, %s119
      %p133 = scmp.eq.s32.totalorder %s45, 1
      %p134 = por %p132, %p133
      %p136 = scmp.ne.s32.totalorder %s119, %s135
      %p137 = scmp.eq.s32.totalorder %s45, 0
      %p138 = por %p136, %p137
      %s140 = sadd.s32 %s139, 1
      %p143 = scmp.eq.s32.totalorder %s39, 1
      %p144 = scmp.ne.s32.totalorder %s139, %s141
      %p145 = scmp.eq.s32.totalorder %s39, 0
      %p146 = por %p144, %p145
      %p147 = scmp.ne.s32.totalorder %s139, %s141
      %p148 = scmp.eq.s32.totalorder %s44, 1
      %p149 = por %p147, %p148
      %p150 = scmp.ne.s32.totalorder %s141, %s142
      %p151 = scmp.eq.s32.totalorder %s44, 0
      %p152 = por %p150, %p151
      %p153 = scmp.ne.s32.totalorder %s141, %s142
      %p154 = scmp.eq.s32.totalorder %s45, 1
      %p155 = por %p153, %p154
      %p157 = scmp.ne.s32.totalorder %s142, %s156
      %p158 = scmp.eq.s32.totalorder %s45, 0
      %p159 = por %p157, %p158
      %s161 = sadd.s32 %s160, 1
      %p164 = scmp.eq.s32.totalorder %s39, 1
      %p165 = scmp.ne.s32.totalorder %s160, %s162
      %p166 = scmp.eq.s32.totalorder %s39, 0
      %p167 = por %p165, %p166
      %p168 = scmp.ne.s32.totalorder %s160, %s162
      %p169 = scmp.eq.s32.totalorder %s44, 1
      %p170 = por %p168, %p169
      %p171 = scmp.ne.s32.totalorder %s162, %s163
      %p172 = scmp.eq.s32.totalorder %s44, 0
      %p173 = por %p171, %p172
      %p174 = scmp.ne.s32.totalorder %s162, %s163
      %p175 = scmp.eq.s32.totalorder %s45, 1
      %p176 = por %p174, %p175
      %p178 = scmp.ne.s32.totalorder %s163, %s177
      %p179 = scmp.eq.s32.totalorder %s45, 0
      %p180 = por %p178, %p179
      %s182 = sadd.s32 %s181, 1
      %p185 = scmp.eq.s32.totalorder %s39, 1
      %p186 = scmp.ne.s32.totalorder %s181, %s183
      %p187 = scmp.eq.s32.totalorder %s39, 0
      %p188 = por %p186, %p187
      %p189 = scmp.ne.s32.totalorder %s181, %s183
      %p190 = scmp.eq.s32.totalorder %s44, 1
      %p191 = por %p189, %p190
      %p192 = scmp.ne.s32.totalorder %s183, %s184
      %p193 = scmp.eq.s32.totalorder %s44, 0
      %p194 = por %p192, %p193
      %p195 = scmp.ne.s32.totalorder %s183, %s184
      %p196 = scmp.eq.s32.totalorder %s45, 1
      %p197 = por %p195, %p196
      %p199 = scmp.ne.s32.totalorder %s184, %s198
      %p200 = scmp.eq.s32.totalorder %s45, 0
      %p201 = por %p199, %p200
      %s203 = sadd.s32 %s202, 1
      %p206 = scmp.eq.s32.totalorder %s39, 1
      %p207 = scmp.ne.s32.totalorder %s202, %s204
      %p208 = scmp.eq.s32.totalorder %s39, 0
      %p209 = por %p207, %p208
      %p210 = scmp.ne.s32.totalorder %s202, %s204
      %p211 = scmp.eq.s32.totalorder %s44, 1
      %p212 = por %p210, %p211
      %p213 = scmp.ne.s32.totalorder %s204, %s205
      %p214 = scmp.eq.s32.totalorder %s44, 0
      %p215 = por %p213, %p214
      %p216 = scmp.ne.s32.totalorder %s204, %s205
      %p217 = scmp.eq.s32.totalorder %s45, 1
      %p218 = por %p216, %p217
      %p220 = scmp.ne.s32.totalorder %s205, %s219
      %p221 = scmp.eq.s32.totalorder %s45, 0
      %p222 = por %p220, %p221
      %s224 = sadd.s32 %s223, 1
      %p227 = scmp.eq.s32.totalorder %s39, 1
      %p228 = scmp.ne.s32.totalorder %s223, %s225
      %p229 = scmp.eq.s32.totalorder %s39, 0
      %p230 = por %p228, %p229
      %p231 = scmp.ne.s32.totalorder %s223, %s225
      %p232 = scmp.eq.s32.totalorder %s44, 1
      %p233 = por %p231, %p232
      %p234 = scmp.ne.s32.totalorder %s225, %s226
      %p235 = scmp.eq.s32.totalorder %s44, 0
      %p236 = por %p234, %p235
      %p237 = scmp.ne.s32.totalorder %s225, %s226
      %p238 = scmp.eq.s32.totalorder %s45, 1
      %p239 = por %p237, %p238
      %p241 = scmp.ne.s32.totalorder %s226, %s240
      %p242 = scmp.eq.s32.totalorder %s45, 0
      %p243 = por %p241, %p242
      %s245 = sadd.s32 %s244, 1
      %p248 = scmp.eq.s32.totalorder %s39, 1
      %p249 = scmp.ne.s32.totalorder %s244, %s246
      %p250 = scmp.eq.s32.totalorder %s39, 0
      %p251 = por %p249, %p250
      %p252 = scmp.ne.s32.totalorder %s244, %s246
      %p253 = scmp.eq.s32.totalorder %s44, 1
      %p254 = por %p252, %p253
      %p255 = scmp.ne.s32.totalorder %s246, %s247
      %p256 = scmp.eq.s32.totalorder %s44, 0
      %p257 = por %p255, %p256
      %p258 = scmp.ne.s32.totalorder %s246, %s247
      %p259 = scmp.eq.s32.totalorder %s45, 1
      %p260 = por %p258, %p259
      %p262 = scmp.ne.s32.totalorder %s247, %s261
      %p263 = scmp.eq.s32.totalorder %s45, 0
      %p264 = por %p262, %p263
      %s266 = sadd.s32 %s265, 1
      %p269 = scmp.eq.s32.totalorder %s39, 1
      %p270 = scmp.ne.s32.totalorder %s265, %s267
      %p271 = scmp.eq.s32.totalorder %s39, 0
      %p272 = por %p270, %p271
      %p273 = scmp.ne.s32.totalorder %s265, %s267
      %p274 = scmp.eq.s32.totalorder %s44, 1
      %p275 = por %p273, %p274
      %p276 = scmp.ne.s32.totalorder %s267, %s268
      %p277 = scmp.eq.s32.totalorder %s44, 0
      %p278 = por %p276, %p277
      %p279 = scmp.ne.s32.totalorder %s267, %s268
      %p280 = scmp.eq.s32.totalorder %s45, 1
      %p281 = por %p279, %p280
      %p283 = scmp.ne.s32.totalorder %s268, %s282
      %p284 = scmp.eq.s32.totalorder %s45, 0
      %p285 = por %p283, %p284
      %s287 = sadd.s32 %s286, 1
      %p290 = scmp.eq.s32.totalorder %s39, 1
      %p291 = scmp.ne.s32.totalorder %s286, %s288
      %p292 = scmp.eq.s32.totalorder %s39, 0
      %p293 = por %p291, %p292
      %p294 = scmp.ne.s32.totalorder %s286, %s288
      %p295 = scmp.eq.s32.totalorder %s44, 1
      %p296 = por %p294, %p295
      %p297 = scmp.ne.s32.totalorder %s288, %s289
      %p298 = scmp.eq.s32.totalorder %s44, 0
      %p299 = por %p297, %p298
      %p300 = scmp.ne.s32.totalorder %s288, %s289
      %p301 = scmp.eq.s32.totalorder %s45, 1
      %p302 = por %p300, %p301
      %p304 = scmp.ne.s32.totalorder %s289, %s303
      %p305 = scmp.eq.s32.totalorder %s45, 0
      %p306 = por %p304, %p305
      %s308 = sadd.s32 %s307, 1
      %p311 = scmp.eq.s32.totalorder %s39, 1
      %p312 = scmp.ne.s32.totalorder %s307, %s309
      %p313 = scmp.eq.s32.totalorder %s39, 0
      %p314 = por %p312, %p313
      %p315 = scmp.ne.s32.totalorder %s307, %s309
      %p316 = scmp.eq.s32.totalorder %s44, 1
      %p317 = por %p315, %p316
      %p318 = scmp.ne.s32.totalorder %s309, %s310
      %p319 = scmp.eq.s32.totalorder %s44, 0
      %p320 = por %p318, %p319
      %p321 = scmp.ne.s32.totalorder %s309, %s310
      %p322 = scmp.eq.s32.totalorder %s45, 1
      %p323 = por %p321, %p322
      %p325 = scmp.ne.s32.totalorder %s310, %s324
      %p326 = scmp.eq.s32.totalorder %s45, 0
      %p327 = por %p325, %p326
      %s329 = sadd.s32 %s328, 1
      %p332 = scmp.eq.s32.totalorder %s39, 1
      %p333 = scmp.ne.s32.totalorder %s328, %s330
      %p334 = scmp.eq.s32.totalorder %s39, 0
      %p335 = por %p333, %p334
      %p336 = scmp.ne.s32.totalorder %s328, %s330
      %p337 = scmp.eq.s32.totalorder %s44, 1
      %p338 = por %p336, %p337
      %p339 = scmp.ne.s32.totalorder %s330, %s331
      %p340 = scmp.eq.s32.totalorder %s44, 0
      %p341 = por %p339, %p340
      %p342 = scmp.ne.s32.totalorder %s330, %s331
      %p343 = scmp.eq.s32.totalorder %s45, 1
      %p344 = por %p342, %p343
      %p346 = scmp.ne.s32.totalorder %s331, %s345
      %p347 = scmp.eq.s32.totalorder %s45, 0
      %p348 = por %p346, %p347
      %s350 = sadd.s32 %s349, 1
      %p353 = scmp.eq.s32.totalorder %s39, 1
      %p354 = scmp.ne.s32.totalorder %s349, %s351
      %p355 = scmp.eq.s32.totalorder %s39, 0
      %p356 = por %p354, %p355
      %p357 = scmp.ne.s32.totalorder %s349, %s351
      %p358 = scmp.eq.s32.totalorder %s44, 1
      %p359 = por %p357, %p358
      %p360 = scmp.ne.s32.totalorder %s351, %s352
      %p361 = scmp.eq.s32.totalorder %s44, 0
      %p362 = por %p360, %p361
      %p363 = scmp.ne.s32.totalorder %s351, %s352
      %p364 = scmp.eq.s32.totalorder %s45, 1
      %p365 = por %p363, %p364
      %p367 = scmp.ne.s32.totalorder %s352, %s366
      %p368 = scmp.eq.s32.totalorder %s45, 0
      %p369 = por %p367, %p368
      %s371 = sadd.s32 %s370, 1
      %p374 = scmp.eq.s32.totalorder %s39, 1
      %p375 = scmp.ne.s32.totalorder %s370, %s372
      %p376 = scmp.eq.s32.totalorder %s39, 0
      %p377 = por %p375, %p376
      %p378 = scmp.ne.s32.totalorder %s370, %s372
      %p379 = scmp.eq.s32.totalorder %s44, 1
      %p380 = por %p378, %p379
      %p381 = scmp.ne.s32.totalorder %s372, %s373
      %p382 = scmp.eq.s32.totalorder %s44, 0
      %p383 = por %p381, %p382
      %p384 = scmp.ne.s32.totalorder %s372, %s373
      %p385 = scmp.eq.s32.totalorder %s45, 1
      %p386 = por %p384, %p385
      %p388 = scmp.ne.s32.totalorder %s373, %s387
      %p389 = scmp.eq.s32.totalorder %s45, 0
      %p390 = por %p388, %p389
      %s392 = sadd.s32 %s391, 1
      %p395 = scmp.eq.s32.totalorder %s39, 1
      %p396 = scmp.ne.s32.totalorder %s391, %s393
      %p397 = scmp.eq.s32.totalorder %s39, 0
      %p398 = por %p396, %p397
      %p399 = scmp.ne.s32.totalorder %s391, %s393
      %p400 = scmp.eq.s32.totalorder %s44, 1
      %p401 = por %p399, %p400
      %p402 = scmp.ne.s32.totalorder %s393, %s394
      %p403 = scmp.eq.s32.totalorder %s44, 0
      %p404 = por %p402, %p403
      %p405 = scmp.ne.s32.totalorder %s393, %s394
      %p406 = scmp.eq.s32.totalorder %s45, 1
      %p407 = por %p405, %p406
      %p409 = scmp.ne.s32.totalorder %s394, %s408
      %p410 = scmp.eq.s32.totalorder %s45, 0
      %p411 = por %p409, %p410
      %s413 = sadd.s32 %s412, 1
      %p416 = scmp.eq.s32.totalorder %s39, 1
      %p417 = scmp.ne.s32.totalorder %s412, %s414
      %p418 = scmp.eq.s32.totalorder %s39, 0
      %p419 = por %p417, %p418
      %p420 = scmp.ne.s32.totalorder %s412, %s414
      %p421 = scmp.eq.s32.totalorder %s44, 1
      %p422 = por %p420, %p421
      %p423 = scmp.ne.s32.totalorder %s414, %s415
      %p424 = scmp.eq.s32.totalorder %s44, 0
      %p425 = por %p423, %p424
      %p426 = scmp.ne.s32.totalorder %s414, %s415
      %p427 = scmp.eq.s32.totalorder %s45, 1
      %p428 = por %p426, %p427
      %p430 = scmp.ne.s32.totalorder %s415, %s429
      %p431 = scmp.eq.s32.totalorder %s45, 0
      %p432 = por %p430, %p431
      %s433 = ssub.s32 %s46, %s58
      %s434 = ssub.s32 %s47, %s54
      %s435 = sor.u32 %s433, %s434
      %p436 = scmp.eq.s32.totalorder %s435, 0
      %s438 = sadd.s32 %s437, 1
      %s439 = scalar_select %p436, %s437, %s438
      %p442 = pneg %p436
      %p443 = scmp.eq.s32.totalorder %s39, 1
      %p444 = por %p442, %p443
      %p445 = scmp.ne.s32.totalorder %s437, %s440
      %p446 = scmp.eq.s32.totalorder %s39, 0
      %p447 = por %p445, %p446
      %p448 = scmp.ne.s32.totalorder %s437, %s440
      %p449 = scmp.eq.s32.totalorder %s44, 1
      %p450 = por %p448, %p449
      %p451 = scmp.ne.s32.totalorder %s440, %s441
      %p452 = scmp.eq.s32.totalorder %s44, 0
      %p453 = por %p451, %p452
      %p454 = scmp.ne.s32.totalorder %s440, %s441
      %p455 = scmp.eq.s32.totalorder %s45, 1
      %p456 = por %p454, %p455
      %p458 = scmp.ne.s32.totalorder %s441, %s457
      %p459 = scmp.eq.s32.totalorder %s45, 0
      %p460 = por %p458, %p459
      %p461 = scmp.le.s32.totalorder 1, %s39
      %p462 = scmp.lt.s32.totalorder %s39, 3
      %p463 = pnand %p461, %p462
      %p464 = pneg %p463
      // Predicated region
      $region9: #{tpu_custom_call.1} parent=5 // pred_check
        _
      $region10: #{tpu_custom_call.1} parent=5 // pred_check_branch
        %466 = sbr.rel (%p463) target = $region12
      $region11: #{tpu_custom_call.1} parent=5 // pred_region
        %s467 = ssub.s32 %s39, 1
        // Predicated region
        $region13: #{tpu_custom_call.1} parent=11 // pred_check
          %p468 = pneg %p152
        $region14: #{tpu_custom_call.1} parent=11 // pred_check_branch
          %470 = sbr.rel (%p468) target = $region16
        $region15: #{tpu_custom_call.1} parent=11 // pred_region
          %s472 = ssub.s32 256, 256
          %473 = vsyncadd [#allocation10], %s472
          %s474 = sshll.u32 [#allocation9], 4
          %s475 = int_to_ptr.vmem [resolvable:$true] %s474
          %480 = dma.hbm_to_vmem [thread:$0]  %s3, 256, %s475, [#allocation10], 64, 64, 4
        $region16: #{tpu_custom_call.1} parent=11 // pred_fallthru
          _
        // Predicated region
        $region17: #{tpu_custom_call.1} parent=11 // pred_check
          %p481 = pneg %p173
        $region18: #{tpu_custom_call.1} parent=11 // pred_check_branch
          %483 = sbr.rel (%p481) target = $region20
        $region19: #{tpu_custom_call.1} parent=11 // pred_region
          %s485 = ssub.s32 16, 16
          %486 = vsyncadd [#allocation10], %s485
          %s488 = sshll.u32 [#allocation11], 4
          %s489 = int_to_ptr.vmem [resolvable:$true] %s488
          %491 = dma.hbm_to_vmem [thread:$0]  %s4, 16, %s489, [#allocation10]
        $region20: #{tpu_custom_call.1} parent=11 // pred_fallthru
          _
        // Predicated region
        $region21: #{tpu_custom_call.1} parent=11 // pred_check
          %p492 = pneg %p194
        $region22: #{tpu_custom_call.1} parent=11 // pred_check_branch
          %494 = sbr.rel (%p492) target = $region24
        $region23: #{tpu_custom_call.1} parent=11 // pred_region
          %s496 = ssub.s32 256, 256
          %497 = vsyncadd [#allocation13], %s496
          %s498 = sshll.u32 [#allocation12], 4
          %s499 = int_to_ptr.vmem [resolvable:$true] %s498
          %504 = dma.hbm_to_vmem [thread:$0]  %s5, 256, %s499, [#allocation13], 64, 64, 4
        $region24: #{tpu_custom_call.1} parent=11 // pred_fallthru
          _
        // Predicated region
        $region25: #{tpu_custom_call.1} parent=11 // pred_check
          %p505 = pneg %p215
        $region26: #{tpu_custom_call.1} parent=11 // pred_check_branch
          %507 = sbr.rel (%p505) target = $region28
        $region27: #{tpu_custom_call.1} parent=11 // pred_region
          %s509 = ssub.s32 16, 16
          %510 = vsyncadd [#allocation13], %s509
          %s512 = sshll.u32 [#allocation14], 4
          %s513 = int_to_ptr.vmem [resolvable:$true] %s512
          %515 = dma.hbm_to_vmem [thread:$0]  %s6, 16, %s513, [#allocation13]
        $region28: #{tpu_custom_call.1} parent=11 // pred_fallthru
          _
        // Predicated region
        $region29: #{tpu_custom_call.1} parent=11 // pred_check
          %p516 = pneg %p236
        $region30: #{tpu_custom_call.1} parent=11 // pred_check_branch
          %518 = sbr.rel (%p516) target = $region32
        $region31: #{tpu_custom_call.1} parent=11 // pred_region
          %s520 = ssub.s32 256, 256
          %521 = vsyncadd [#allocation16], %s520
          %s522 = sshll.u32 [#allocation15], 4
          %s523 = int_to_ptr.vmem [resolvable:$true] %s522
          %528 = dma.hbm_to_vmem [thread:$0]  %s7, 256, %s523, [#allocation16], 64, 64, 4
        $region32: #{tpu_custom_call.1} parent=11 // pred_fallthru
          _
        // Predicated region
        $region33: #{tpu_custom_call.1} parent=11 // pred_check
          %p529 = pneg %p257
        $region34: #{tpu_custom_call.1} parent=11 // pred_check_branch
          %531 = sbr.rel (%p529) target = $region36
        $region35: #{tpu_custom_call.1} parent=11 // pred_region
          %s533 = ssub.s32 16, 16
          %534 = vsyncadd [#allocation16], %s533
          %s536 = sshll.u32 [#allocation17], 4
          %s537 = int_to_ptr.vmem [resolvable:$true] %s536
          %539 = dma.hbm_to_vmem [thread:$0]  %s8, 16, %s537, [#allocation16]
        $region36: #{tpu_custom_call.1} parent=11 // pred_fallthru
          _
        // Predicated region
        $region37: #{tpu_custom_call.1} parent=11 // pred_check
          %p540 = pneg %p278
        $region38: #{tpu_custom_call.1} parent=11 // pred_check_branch
          %542 = sbr.rel (%p540) target = $region40
        $region39: #{tpu_custom_call.1} parent=11 // pred_region
          %s544 = ssub.s32 16, 16
          %545 = vsyncadd [#allocation19], %s544
          %s547 = sshll.u32 [#allocation18], 4
          %s548 = int_to_ptr.vmem [resolvable:$true] %s547
          %550 = dma.hbm_to_vmem [thread:$0]  %s9, 16, %s548, [#allocation19]
        $region40: #{tpu_custom_call.1} parent=11 // pred_fallthru
          _
        // Predicated region
        $region41: #{tpu_custom_call.1} parent=11 // pred_check
          %p551 = pneg %p299
        $region42: #{tpu_custom_call.1} parent=11 // pred_check_branch
          %553 = sbr.rel (%p551) target = $region44
        $region43: #{tpu_custom_call.1} parent=11 // pred_region
          %s555 = ssub.s32 16, 16
          %556 = vsyncadd [#allocation19], %s555
          %s558 = sshll.u32 [#allocation20], 4
          %s559 = int_to_ptr.vmem [resolvable:$true] %s558
          %561 = dma.hbm_to_vmem [thread:$0]  %s10, 16, %s559, [#allocation19]
        $region44: #{tpu_custom_call.1} parent=11 // pred_fallthru
          _
        // Predicated region
        $region45: #{tpu_custom_call.1} parent=11 // pred_check
          %p562 = pneg %p320
        $region46: #{tpu_custom_call.1} parent=11 // pred_check_branch
          %564 = sbr.rel (%p562) target = $region48
        $region47: #{tpu_custom_call.1} parent=11 // pred_region
          %s566 = ssub.s32 256, 256
          %567 = vsyncadd [#allocation22], %s566
          %s568 = sshll.u32 [#allocation21], 4
          %s569 = int_to_ptr.vmem [resolvable:$true] %s568
          %574 = dma.hbm_to_vmem [thread:$0]  %s11, 256, %s569, [#allocation22], 64, 64, 4
        $region48: #{tpu_custom_call.1} parent=11 // pred_fallthru
          _
        // Predicated region
        $region49: #{tpu_custom_call.1} parent=11 // pred_check
          %p575 = pneg %p341
        $region50: #{tpu_custom_call.1} parent=11 // pred_check_branch
          %577 = sbr.rel (%p575) target = $region52
        $region51: #{tpu_custom_call.1} parent=11 // pred_region
          %s579 = ssub.s32 16, 16
          %580 = vsyncadd [#allocation22], %s579
          %s582 = sshll.u32 [#allocation23], 4
          %s583 = int_to_ptr.vmem [resolvable:$true] %s582
          %585 = dma.hbm_to_vmem [thread:$0]  %s12, 16, %s583, [#allocation22]
        $region52: #{tpu_custom_call.1} parent=11 // pred_fallthru
          _
        // Predicated region
        $region53: #{tpu_custom_call.1} parent=11 // pred_check
          %p586 = pneg %p362
        $region54: #{tpu_custom_call.1} parent=11 // pred_check_branch
          %588 = sbr.rel (%p586) target = $region56
        $region55: #{tpu_custom_call.1} parent=11 // pred_region
          %s590 = ssub.s32 512, 512
          %591 = vsyncadd [#allocation25], %s590
          %s592 = sshll.u32 [#allocation24], 4
          %s593 = int_to_ptr.vmem [resolvable:$true] %s592
          %598 = dma.hbm_to_vmem [thread:$0]  %s13, 512, %s593, [#allocation25], 64, 64, 4
        $region56: #{tpu_custom_call.1} parent=11 // pred_fallthru
          _
        // Predicated region
        $region57: #{tpu_custom_call.1} parent=11 // pred_check
          %p599 = pneg %p383
        $region58: #{tpu_custom_call.1} parent=11 // pred_check_branch
          %601 = sbr.rel (%p599) target = $region60
        $region59: #{tpu_custom_call.1} parent=11 // pred_region
          %s603 = ssub.s32 16, 16
          %604 = vsyncadd [#allocation25], %s603
          %s606 = sshll.u32 [#allocation26], 4
          %s607 = int_to_ptr.vmem [resolvable:$true] %s606
          %609 = dma.hbm_to_vmem [thread:$0]  %s14, 16, %s607, [#allocation25]
        $region60: #{tpu_custom_call.1} parent=11 // pred_fallthru
          _
        // Predicated region
        $region61: #{tpu_custom_call.1} parent=11 // pred_check
          %p610 = pneg %p404
        $region62: #{tpu_custom_call.1} parent=11 // pred_check_branch
          %612 = sbr.rel (%p610) target = $region64
        $region63: #{tpu_custom_call.1} parent=11 // pred_region
          %s614 = ssub.s32 16, 16
          %615 = vsyncadd [#allocation28], %s614
          %s617 = sshll.u32 [#allocation27], 4
          %s618 = int_to_ptr.vmem [resolvable:$true] %s617
          %620 = dma.hbm_to_vmem [thread:$0]  %s15, 16, %s618, [#allocation28]
        $region64: #{tpu_custom_call.1} parent=11 // pred_fallthru
          _
        // Predicated region
        $region65: #{tpu_custom_call.1} parent=11 // pred_check
          %p621 = pneg %p425
        $region66: #{tpu_custom_call.1} parent=11 // pred_check_branch
          %623 = sbr.rel (%p621) target = $region68
        $region67: #{tpu_custom_call.1} parent=11 // pred_region
          %s625 = ssub.s32 16, 16
          %626 = vsyncadd [#allocation28], %s625
          %s628 = sshll.u32 [#allocation29], 4
          %s629 = int_to_ptr.vmem [resolvable:$true] %s628
          %631 = dma.hbm_to_vmem [thread:$0]  %s16, 16, %s629, [#allocation28]
        $region68: #{tpu_custom_call.1} parent=11 // pred_fallthru
          _
      $region12: #{tpu_custom_call.1} parent=5 // pred_fallthru
        _
      %p632 = scmp.lt.s32.totalorder %s39, 2
      // Predicated region
      $region69: #{tpu_custom_call.1} parent=5 // pred_check
        %p633 = pneg %p632
      $region70: #{tpu_custom_call.1} parent=5 // pred_check_branch
        %635 = sbr.rel (%p633) target = $region72
      $region71: #{tpu_custom_call.1} parent=5 // pred_region
        // Predicated region
        $region73: #{tpu_custom_call.1} parent=71 // pred_check
          %p636 = pneg %p71
        $region74: #{tpu_custom_call.1} parent=71 // pred_check_branch
          %638 = sbr.rel (%p636) target = $region76
        $region75: #{tpu_custom_call.1} parent=71 // pred_region
          %s639 = sand.u32 %s61, 1
          %s640 = scalar_lea.sflag [#allocation4], %s639
          %s641 = sand.u32 %s61, 1
          %s642 = smul.addr %s641, 8
          %s643 = scalar_lea.vmem [#allocation3], %s642
          %s645 = ssub.s32 128, 128
          %646 = vsyncadd %s640, %s645
          %s647 = smul.addr %s46, 128
          %s648 = scalar_lea.hbm %s0, %s647
          %s650 = sshll.u32 %s643, 4
          %s651 = int_to_ptr.vmem [resolvable:$true] %s650
          %653 = dma.hbm_to_vmem [thread:$0]  %s648, 128, %s651, %s640
        $region76: #{tpu_custom_call.1} parent=71 // pred_fallthru
          _
        // Predicated region
        $region77: #{tpu_custom_call.1} parent=71 // pred_check
          %p654 = pneg %p99
        $region78: #{tpu_custom_call.1} parent=71 // pred_check_branch
          %656 = sbr.rel (%p654) target = $region80
        $region79: #{tpu_custom_call.1} parent=71 // pred_region
          %s657 = sand.u32 %s39, 1
          %s658 = scalar_lea.sflag [#allocation7], %s657
          %s659 = sand.u32 %s89, 1
          %s660 = smul.addr %s659, 8
          %s661 = scalar_lea.vmem [#allocation6], %s660
          %s663 = ssub.s32 128, 128
          %664 = vsyncadd %s658, %s663
          %s665 = sadd.s32 %s47, %s46
          %s666 = smul.addr %s665, 128
          %s667 = scalar_lea.hbm %s1, %s666
          %s669 = sshll.u32 %s661, 4
          %s670 = int_to_ptr.vmem [resolvable:$true] %s669
          %672 = dma.hbm_to_vmem [thread:$0]  %s667, 128, %s670, %s658
        $region80: #{tpu_custom_call.1} parent=71 // pred_fallthru
          _
        // Predicated region
        $region81: #{tpu_custom_call.1} parent=71 // pred_check
          %p673 = pneg %p125
        $region82: #{tpu_custom_call.1} parent=71 // pred_check_branch
          %675 = sbr.rel (%p673) target = $region84
        $region83: #{tpu_custom_call.1} parent=71 // pred_region
          %s676 = sand.u32 %s39, 1
          %s677 = scalar_lea.sflag [#allocation7], %s676
          %s678 = sand.u32 %s115, 1
          %s679 = scalar_lea.vmem [#allocation8], %s678
          %s681 = ssub.s32 16, 16
          %682 = vsyncadd %s677, %s681
          %s683 = smul.addr %s46, 16
          %s684 = scalar_lea.hbm %s2, %s683
          %s686 = sshll.u32 %s679, 4
          %s687 = int_to_ptr.vmem [resolvable:$true] %s686
          %689 = dma.hbm_to_vmem [thread:$0]  %s684, 16, %s687, %s677
        $region84: #{tpu_custom_call.1} parent=71 // pred_fallthru
          _
      $region72: #{tpu_custom_call.1} parent=5 // pred_fallthru
        _
      %p690 = scmp.le.s32.totalorder 1, %s39
      %p691 = scmp.lt.s32.totalorder %s39, 3
      %p692 = pnand %p690, %p691
      %p693 = pneg %p692
      // Predicated region
      $region85: #{tpu_custom_call.1} parent=5 // pred_check
        _
      $region86: #{tpu_custom_call.1} parent=5 // pred_check_branch
        %695 = sbr.rel (%p692) target = $region88
      $region87: #{tpu_custom_call.1} parent=5 // pred_region
        %s696 = ssub.s32 %s39, 1
        %s697 = sand.u32 %s64, 1
        %s698 = scalar_lea.sflag [#allocation4], %s697
        %s699 = sand.u32 %s64, 1
        %s700 = smul.addr %s699, 8
        %s701 = scalar_lea.vmem [#allocation3], %s700
        // Predicated region
        $region89: #{tpu_custom_call.1} parent=87 // pred_check
          %p702 = pneg %p77
        $region90: #{tpu_custom_call.1} parent=87 // pred_check_branch
          %704 = sbr.rel (%p702) target = $region92
        $region91: #{tpu_custom_call.1} parent=87 // pred_region
          %705 = dma.done %s698, 128
        $region92: #{tpu_custom_call.1} parent=87 // pred_fallthru
          _
        %s706 = sand.u32 %s44, 1
        %s707 = scalar_lea.sflag [#allocation7], %s706
        %s708 = sand.u32 %s92, 1
        %s709 = smul.addr %s708, 8
        %s710 = scalar_lea.vmem [#allocation6], %s709
        // Predicated region
        $region93: #{tpu_custom_call.1} parent=87 // pred_check
          %p711 = pneg %p105
        $region94: #{tpu_custom_call.1} parent=87 // pred_check_branch
          %713 = sbr.rel (%p711) target = $region96
        $region95: #{tpu_custom_call.1} parent=87 // pred_region
          %714 = dma.done %s707, 128
        $region96: #{tpu_custom_call.1} parent=87 // pred_fallthru
          _
        %s715 = sand.u32 %s44, 1
        %s716 = scalar_lea.sflag [#allocation7], %s715
        %s717 = sand.u32 %s118, 1
        %s718 = scalar_lea.vmem [#allocation8], %s717
        // Predicated region
        $region97: #{tpu_custom_call.1} parent=87 // pred_check
          %p719 = pneg %p131
        $region98: #{tpu_custom_call.1} parent=87 // pred_check_branch
          %721 = sbr.rel (%p719) target = $region100
        $region99: #{tpu_custom_call.1} parent=87 // pred_region
          %722 = dma.done %s716, 16
        $region100: #{tpu_custom_call.1} parent=87 // pred_fallthru
          _
        // Predicated region
        $region101: #{tpu_custom_call.1} parent=87 // pred_check
          %p723 = pneg %p152
        $region102: #{tpu_custom_call.1} parent=87 // pred_check_branch
          %725 = sbr.rel (%p723) target = $region104
        $region103: #{tpu_custom_call.1} parent=87 // pred_region
          %726 = dma.done [#allocation10], 256
        $region104: #{tpu_custom_call.1} parent=87 // pred_fallthru
          _
        // Predicated region
        $region105: #{tpu_custom_call.1} parent=87 // pred_check
          %p727 = pneg %p173
        $region106: #{tpu_custom_call.1} parent=87 // pred_check_branch
          %729 = sbr.rel (%p727) target = $region108
        $region107: #{tpu_custom_call.1} parent=87 // pred_region
          %730 = dma.done [#allocation10], 16
        $region108: #{tpu_custom_call.1} parent=87 // pred_fallthru
          _
        // Predicated region
        $region109: #{tpu_custom_call.1} parent=87 // pred_check
          %p731 = pneg %p194
        $region110: #{tpu_custom_call.1} parent=87 // pred_check_branch
          %733 = sbr.rel (%p731) target = $region112
        $region111: #{tpu_custom_call.1} parent=87 // pred_region
          %734 = dma.done [#allocation13], 256
        $region112: #{tpu_custom_call.1} parent=87 // pred_fallthru
          _
        // Predicated region
        $region113: #{tpu_custom_call.1} parent=87 // pred_check
          %p735 = pneg %p215
        $region114: #{tpu_custom_call.1} parent=87 // pred_check_branch
          %737 = sbr.rel (%p735) target = $region116
        $region115: #{tpu_custom_call.1} parent=87 // pred_region
          %738 = dma.done [#allocation13], 16
        $region116: #{tpu_custom_call.1} parent=87 // pred_fallthru
          _
        // Predicated region
        $region117: #{tpu_custom_call.1} parent=87 // pred_check
          %p739 = pneg %p236
        $region118: #{tpu_custom_call.1} parent=87 // pred_check_branch
          %741 = sbr.rel (%p739) target = $region120
        $region119: #{tpu_custom_call.1} parent=87 // pred_region
          %742 = dma.done [#allocation16], 256
        $region120: #{tpu_custom_call.1} parent=87 // pred_fallthru
          _
        // Predicated region
        $region121: #{tpu_custom_call.1} parent=87 // pred_check
          %p743 = pneg %p257
        $region122: #{tpu_custom_call.1} parent=87 // pred_check_branch
          %745 = sbr.rel (%p743) target = $region124
        $region123: #{tpu_custom_call.1} parent=87 // pred_region
          %746 = dma.done [#allocation16], 16
        $region124: #{tpu_custom_call.1} parent=87 // pred_fallthru
          _
        // Predicated region
        $region125: #{tpu_custom_call.1} parent=87 // pred_check
          %p747 = pneg %p278
        $region126: #{tpu_custom_call.1} parent=87 // pred_check_branch
          %749 = sbr.rel (%p747) target = $region128
        $region127: #{tpu_custom_call.1} parent=87 // pred_region
          %750 = dma.done [#allocation19], 16
        $region128: #{tpu_custom_call.1} parent=87 // pred_fallthru
          _
        // Predicated region
        $region129: #{tpu_custom_call.1} parent=87 // pred_check
          %p751 = pneg %p299
        $region130: #{tpu_custom_call.1} parent=87 // pred_check_branch
          %753 = sbr.rel (%p751) target = $region132
        $region131: #{tpu_custom_call.1} parent=87 // pred_region
          %754 = dma.done [#allocation19], 16
        $region132: #{tpu_custom_call.1} parent=87 // pred_fallthru
          _
        // Predicated region
        $region133: #{tpu_custom_call.1} parent=87 // pred_check
          %p755 = pneg %p320
        $region134: #{tpu_custom_call.1} parent=87 // pred_check_branch
          %757 = sbr.rel (%p755) target = $region136
        $region135: #{tpu_custom_call.1} parent=87 // pred_region
          %758 = dma.done [#allocation22], 256
        $region136: #{tpu_custom_call.1} parent=87 // pred_fallthru
          _
        // Predicated region
        $region137: #{tpu_custom_call.1} parent=87 // pred_check
          %p759 = pneg %p341
        $region138: #{tpu_custom_call.1} parent=87 // pred_check_branch
          %761 = sbr.rel (%p759) target = $region140
        $region139: #{tpu_custom_call.1} parent=87 // pred_region
          %762 = dma.done [#allocation22], 16
        $region140: #{tpu_custom_call.1} parent=87 // pred_fallthru
          _
        // Predicated region
        $region141: #{tpu_custom_call.1} parent=87 // pred_check
          %p763 = pneg %p362
        $region142: #{tpu_custom_call.1} parent=87 // pred_check_branch
          %765 = sbr.rel (%p763) target = $region144
        $region143: #{tpu_custom_call.1} parent=87 // pred_region
          %766 = dma.done [#allocation25], 512
        $region144: #{tpu_custom_call.1} parent=87 // pred_fallthru
          _
        // Predicated region
        $region145: #{tpu_custom_call.1} parent=87 // pred_check
          %p767 = pneg %p383
        $region146: #{tpu_custom_call.1} parent=87 // pred_check_branch
          %769 = sbr.rel (%p767) target = $region148
        $region147: #{tpu_custom_call.1} parent=87 // pred_region
          %770 = dma.done [#allocation25], 16
        $region148: #{tpu_custom_call.1} parent=87 // pred_fallthru
          _
        // Predicated region
        $region149: #{tpu_custom_call.1} parent=87 // pred_check
          %p771 = pneg %p404
        $region150: #{tpu_custom_call.1} parent=87 // pred_check_branch
          %773 = sbr.rel (%p771) target = $region152
        $region151: #{tpu_custom_call.1} parent=87 // pred_region
          %774 = dma.done [#allocation28], 16
        $region152: #{tpu_custom_call.1} parent=87 // pred_fallthru
          _
        // Predicated region
        $region153: #{tpu_custom_call.1} parent=87 // pred_check
          %p775 = pneg %p425
        $region154: #{tpu_custom_call.1} parent=87 // pred_check_branch
          %777 = sbr.rel (%p775) target = $region156
        $region155: #{tpu_custom_call.1} parent=87 // pred_region
          %778 = dma.done [#allocation28], 16
        $region156: #{tpu_custom_call.1} parent=87 // pred_fallthru
          _
        %s779 = sand.u32 %s64, 1
        %s780 = scalar_lea.sflag [#allocation4], %s779
        %s781 = sand.u32 %s64, 1
        %s782 = smul.addr %s781, 8
        %s783 = scalar_lea.vmem [#allocation3], %s782
        %p784 = pneg %p77
        %p785 = pneg %p74
        %s786 = sand.u32 %s44, 1
        %s787 = scalar_lea.sflag [#allocation7], %s786
        %s788 = sand.u32 %s92, 1
        %s789 = smul.addr %s788, 8
        %s790 = scalar_lea.vmem [#allocation6], %s789
        %p791 = pneg %p105
        %p792 = pneg %p102
        %s793 = sand.u32 %s44, 1
        %s794 = scalar_lea.sflag [#allocation7], %s793
        %s795 = sand.u32 %s118, 1
        %s796 = scalar_lea.vmem [#allocation8], %s795
        %p797 = pneg %p131
        %p798 = pneg %p128
        %p799 = pneg %p152
        %p800 = pneg %p149
        %p801 = pneg %p173
        %p802 = pneg %p170
        %p803 = pneg %p194
        %p804 = pneg %p191
        %p805 = pneg %p215
        %p806 = pneg %p212
        %p807 = pneg %p236
        %p808 = pneg %p233
        %p809 = pneg %p257
        %p810 = pneg %p254
        %p811 = pneg %p278
        %p812 = pneg %p275
        %p813 = pneg %p299
        %p814 = pneg %p296
        %p815 = pneg %p320
        %p816 = pneg %p317
        %p817 = pneg %p341
        %p818 = pneg %p338
        %p819 = pneg %p362
        %p820 = pneg %p359
        %p821 = pneg %p383
        %p822 = pneg %p380
        %p823 = pneg %p404
        %p824 = pneg %p401
        %p825 = pneg %p425
        %p826 = pneg %p422
        %p827 = pneg %p453
        %p828 = pneg %p450
        %s829 = sand.u32 %s440, 1
        %s830 = scalar_lea.sflag [#allocation5], %s829
        %s831 = sand.u32 %s440, 1
        %s832 = smul.addr %s831, 8
        %s833 = scalar_lea.vmem [#allocation30], %s832
        %v835 = vld [vmem:[%s701] sm:$0xff]
        %v836 = vpack.c.bf16 %v835, %v835
        %v837 = vld [vmem:[%s710] sm:$0xff]
        %v838 = vpack.c.bf16 %v837, %v837
        %v839 = vld [vmem:[#allocation9] sm:$0xf]
        %v840 = vld [vmem:[#allocation9 + $0x4] sm:$0xf]
        %v841 = vld [vmem:[#allocation9 + $0x8] sm:$0xf]
        %v842 = vld [vmem:[#allocation9 + $0xc] sm:$0xf]
        %v843 = vld [vmem:[#allocation11] sm:$0x1]
        %v845 = vlaneseq
        %v846 = vshrl.u32 %v845, 7
        %v847 = vsub.s32 0, %v846
        %v848 = vrot.slane %v843, %v847
        %v854 = vunpack.c.l.b16 %v839
        %v855 = vunpack.c.l.b16 %v840
        %v856 = vunpack.c.l.b16 %v841
        %v857 = vunpack.c.l.b16 %v842
        %v858 = vpack.c.b16 %v855, %v854
        %v859 = vpack.c.b16 %v857, %v856
        %vm862 = vcmask 261120
        %v864 = vsel %vm862, %v838, 0
        %866 = vmatprep.subr.bf16.mxu0 0
        %867 = vmatpush1.bf16.msra.mxu0 %v858
        %868 = vmatprep.subr.bf16.mxu0 0
        %869 = vmatpush1.bf16.msra.mxu0 %v859
        %870 = vmatprep.subr.bf16.mxu0 0
        %871 = vmatpush1.bf16.msra.mxu0 0
        %872 = vmatprep.subr.bf16.mxu0 0
        %873 = vmatpush1.bf16.msra.mxu0 0
        %874 = vmatprep.subr.bf16.mxu0 0
        %875 = vmatpush1.bf16.msra.mxu0 0
        %876 = vmatprep.subr.bf16.mxu0 0
        %877 = vmatpush1.bf16.msra.mxu0 0
        %878 = vmatprep.subr.bf16.mxu0 0
        %879 = vmatpush1.bf16.msra.mxu0 0
        %880 = vmatprep.subr.bf16.mxu0 0
        %881 = vmatpush1.bf16.msra.mxu0 0
        %882 = vmatprep.subr.bf16.mxu0 0
        %883 = vmatpush1.bf16.msra.mxu0 0
        %884 = vmatprep.subr.bf16.mxu0 0
        %885 = vmatpush1.bf16.msra.mxu0 0
        %886 = vmatprep.subr.bf16.mxu0 0
        %887 = vmatpush1.bf16.msra.mxu0 0
        %888 = vmatprep.subr.bf16.mxu0 0
        %889 = vmatpush1.bf16.msra.mxu0 0
        %890 = vmatprep.subr.bf16.mxu0 0
        %891 = vmatpush1.bf16.msra.mxu0 0
        %892 = vmatprep.subr.bf16.mxu0 0
        %893 = vmatpush1.bf16.msra.mxu0 0
        %894 = vmatprep.subr.bf16.mxu0 0
        %895 = vmatpush1.bf16.msra.mxu0 0
        %896 = vmatprep.subr.bf16.mxu0 0
        %897 = vmatpush1.bf16.msra.mxu0 0
        %898 = vmatprep.mubr.bf16.mxu0 0
        %899 = vmatmul.mubr.bf16.gmra.mrb[0].mxu0 %v864
        %v900 = vpop.f32.mrb[0].mxu0
        %v901 = vadd.f32 %v848, %v900
        %v902 = vpop.f32.mrb[0].mxu0
        %v903 = vpop.f32.mrb[0].mxu0
        %v904 = vpop.f32.mrb[0].mxu0
        %905 = vdwg.mxu0
        %v906 = vld [vmem:[#allocation12] sm:$0xf]
        %v907 = vld [vmem:[#allocation12 + $0x4] sm:$0xf]
        %v908 = vld [vmem:[#allocation12 + $0x8] sm:$0xf]
        %v909 = vld [vmem:[#allocation12 + $0xc] sm:$0xf]
        %v910 = vld [vmem:[#allocation14] sm:$0x1]
        %v912 = vlaneseq
        %v913 = vshrl.u32 %v912, 7
        %v914 = vsub.s32 0, %v913
        %v915 = vrot.slane %v910, %v914
        %v921 = vunpack.c.l.b16 %v906
        %v922 = vunpack.c.l.b16 %v907
        %v923 = vunpack.c.l.b16 %v908
        %v924 = vunpack.c.l.b16 %v909
        %v925 = vpack.c.b16 %v922, %v921
        %v926 = vpack.c.b16 %v924, %v923
        %v930 = vsel %vm862, %v836, 0
        %932 = vmatprep.subr.bf16.mxu0 0
        %933 = vmatpush1.bf16.msra.mxu0 %v925
        %934 = vmatprep.subr.bf16.mxu0 0
        %935 = vmatpush1.bf16.msra.mxu0 %v926
        %936 = vmatprep.subr.bf16.mxu0 0
        %937 = vmatpush1.bf16.msra.mxu0 0
        %938 = vmatprep.subr.bf16.mxu0 0
        %939 = vmatpush1.bf16.msra.mxu0 0
        %940 = vmatprep.subr.bf16.mxu0 0
        %941 = vmatpush1.bf16.msra.mxu0 0
        %942 = vmatprep.subr.bf16.mxu0 0
        %943 = vmatpush1.bf16.msra.mxu0 0
        %944 = vmatprep.subr.bf16.mxu0 0
        %945 = vmatpush1.bf16.msra.mxu0 0
        %946 = vmatprep.subr.bf16.mxu0 0
        %947 = vmatpush1.bf16.msra.mxu0 0
        %948 = vmatprep.subr.bf16.mxu0 0
        %949 = vmatpush1.bf16.msra.mxu0 0
        %950 = vmatprep.subr.bf16.mxu0 0
        %951 = vmatpush1.bf16.msra.mxu0 0
        %952 = vmatprep.subr.bf16.mxu0 0
        %953 = vmatpush1.bf16.msra.mxu0 0
        %954 = vmatprep.subr.bf16.mxu0 0
        %955 = vmatpush1.bf16.msra.mxu0 0
        %956 = vmatprep.subr.bf16.mxu0 0
        %957 = vmatpush1.bf16.msra.mxu0 0
        %958 = vmatprep.subr.bf16.mxu0 0
        %959 = vmatpush1.bf16.msra.mxu0 0
        %960 = vmatprep.subr.bf16.mxu0 0
        %961 = vmatpush1.bf16.msra.mxu0 0
        %962 = vmatprep.subr.bf16.mxu0 0
        %963 = vmatpush1.bf16.msra.mxu0 0
        %964 = vmatprep.mubr.bf16.mxu0 0
        %965 = vmatmul.mubr.bf16.gmra.mrb[0].mxu0 %v930
        %v966 = vpop.f32.mrb[0].mxu0
        %v967 = vadd.f32 %v915, %v966
        %v968 = vpop.f32.mrb[0].mxu0
        %v969 = vpop.f32.mrb[0].mxu0
        %v970 = vpop.f32.mrb[0].mxu0
        %971 = vdwg.mxu0
        %v972 = vmul.f32 %v901, 0.35355338
        %v973 = vpack.c.bf16 %v972, %v972
        %v974 = vpack.c.bf16 %v967, %v967
        %v975 = vld [vmem:[%s718] sm:$0x1]
        %v977 = vlaneseq
        %v978 = vshrl.u32 %v977, 7
        %v979 = vsub.s32 0, %v978
        %v980 = vrot.slane %v975, %v979
        %vm982 = vcmask 64512
        %v984 = vsel %vm982, %v973, 0
        %v987 = vsel %vm982, %v974, 0
        %989 = vmatprep.subr.bf16.mxu0 0
        %990 = vmatpush1.bf16.xpose.msra.mxu0 %v987
        %991 = vmatprep.subr.bf16.mxu0 0
        %992 = vmatpush1.bf16.xpose.msra.mxu0 0
        %993 = vmatprep.subr.bf16.mxu0 0
        %994 = vmatpush1.bf16.xpose.msra.mxu0 0
        %995 = vmatprep.subr.bf16.mxu0 0
        %996 = vmatpush1.bf16.xpose.msra.mxu0 0
        %997 = vmatprep.subr.bf16.mxu0 0
        %998 = vmatpush1.bf16.xpose.msra.mxu0 0
        %999 = vmatprep.subr.bf16.mxu0 0
        %1000 = vmatpush1.bf16.xpose.msra.mxu0 0
        %1001 = vmatprep.subr.bf16.mxu0 0
        %1002 = vmatpush1.bf16.xpose.msra.mxu0 0
        %1003 = vmatprep.subr.bf16.mxu0 0
        %1004 = vmatpush1.bf16.xpose.msra.mxu0 0
        %1005 = vmatprep.subr.bf16.mxu0 0
        %1006 = vmatpush1.bf16.xpose.msra.mxu0 0
        %1007 = vmatprep.subr.bf16.mxu0 0
        %1008 = vmatpush1.bf16.xpose.msra.mxu0 0
        %1009 = vmatprep.subr.bf16.mxu0 0
        %1010 = vmatpush1.bf16.xpose.msra.mxu0 0
        %1011 = vmatprep.subr.bf16.mxu0 0
        %1012 = vmatpush1.bf16.xpose.msra.mxu0 0
        %1013 = vmatprep.subr.bf16.mxu0 0
        %1014 = vmatpush1.bf16.xpose.msra.mxu0 0
        %1015 = vmatprep.subr.bf16.mxu0 0
        %1016 = vmatpush1.bf16.xpose.msra.mxu0 0
        %1017 = vmatprep.subr.bf16.mxu0 0
        %1018 = vmatpush1.bf16.xpose.msra.mxu0 0
        %1019 = vmatprep.subr.bf16.mxu0 0
        %1020 = vmatpush1.bf16.xpose.msra.mxu0 0
        %1021 = vmatprep.mubr.bf16.mxu0 0
        %1022 = vmatmul.mubr.bf16.gmra.mrb[0].mxu0 %v984
        %v1023 = vpop.f32.mrb[0].mxu0
        %v1024 = vadd.f32 %v980, %v1023
        %v1025 = vpop.f32.mrb[0].mxu0
        %v1026 = vpop.f32.mrb[0].mxu0
        %v1027 = vpop.f32.mrb[0].mxu0
        %1028 = vdwg.mxu0
        %v1029 = vsel %vm982, %v1024, -inf
        %1030 = vmax.xlane.f32.xlu0 %v1029
        %v1031 = vpop.xlane.xlu0 %1030
        %v1032 = vsub.f32 %v1024, %v1031
        %v1033 = vmul.f32 %v1032, 1.442695
        %v1034 = vpow.pop %v1033
        %v1035 = vsel %vm982, %v1034, 0.0
        %1036 = vadd.xlane.f32.xlu0 %v1035
        %v1037 = vpop.xlane.xlu0 %1036
        %v1038 = vrcp.pop %v1037
        %v1039 = vmul.f32 %v1034, %v1038
        %v1040 = vpack.c.bf16 %v1039, %v1039
        %1042 = vrot.lane.b32.xlu0 %v974, 96
        %v1043 = vpop.permute.xlu0 %1042
        %v1045 = vsel %vm982, %v1040, 0
        %vm1047 = vcmask 1043456
        %v1049 = vsel %vm1047, %v1043, 0
        %1051 = vmatprep.subr.bf16.mxu0 0
        %1052 = vmatpush1.bf16.msra.mxu0 %v1049
        %1053 = vmatprep.subr.bf16.mxu0 0
        %1054 = vmatpush1.bf16.msra.mxu0 0
        %1055 = vmatprep.subr.bf16.mxu0 0
        %1056 = vmatpush1.bf16.msra.mxu0 0
        %1057 = vmatprep.subr.bf16.mxu0 0
        %1058 = vmatpush1.bf16.msra.mxu0 0
        %1059 = vmatprep.subr.bf16.mxu0 0
        %1060 = vmatpush1.bf16.msra.mxu0 0
        %1061 = vmatprep.subr.bf16.mxu0 0
        %1062 = vmatpush1.bf16.msra.mxu0 0
        %1063 = vmatprep.subr.bf16.mxu0 0
        %1064 = vmatpush1.bf16.msra.mxu0 0
        %1065 = vmatprep.subr.bf16.mxu0 0
        %1066 = vmatpush1.bf16.msra.mxu0 0
        %1067 = vmatprep.subr.bf16.mxu0 0
        %1068 = vmatpush1.bf16.msra.mxu0 0
        %1069 = vmatprep.subr.bf16.mxu0 0
        %1070 = vmatpush1.bf16.msra.mxu0 0
        %1071 = vmatprep.subr.bf16.mxu0 0
        %1072 = vmatpush1.bf16.msra.mxu0 0
        %1073 = vmatprep.subr.bf16.mxu0 0
        %1074 = vmatpush1.bf16.msra.mxu0 0
        %1075 = vmatprep.subr.bf16.mxu0 0
        %1076 = vmatpush1.bf16.msra.mxu0 0
        %1077 = vmatprep.subr.bf16.mxu0 0
        %1078 = vmatpush1.bf16.msra.mxu0 0
        %1079 = vmatprep.subr.bf16.mxu0 0
        %1080 = vmatpush1.bf16.msra.mxu0 0
        %1081 = vmatprep.subr.bf16.mxu0 0
        %1082 = vmatpush1.bf16.msra.mxu0 0
        %1083 = vmatprep.mubr.bf16.mxu0 0
        %1084 = vmatmul.mubr.bf16.gmra.mrb[0].mxu0 %v1045
        %v1085 = vpop.f32.mrb[0].mxu0
        %v1086 = vadd.f32 0.0, %v1085
        %v1087 = vpop.f32.mrb[0].mxu0
        %v1088 = vpop.f32.mrb[0].mxu0
        %v1089 = vpop.f32.mrb[0].mxu0
        %1090 = vdwg.mxu0
        %1091 = vst.msk [vmem:[#allocation2] sm:$0xff] %vm982, %v1086
        %1093 = vrot.lane.b32.xlu0 %v973, 120
        %v1094 = vpop.permute.xlu0 %1093
        %1095 = vrot.lane.b32.xlu0 %v974, 120
        %v1096 = vpop.permute.xlu0 %1095
        %v1098 = vsel %vm982, %v1094, 0
        %v1101 = vsel %vm982, %v1096, 0
        %1103 = vmatprep.subr.bf16.mxu0 0
        %1104 = vmatpush1.bf16.xpose.msra.mxu0 %v1101
        %1105 = vmatprep.subr.bf16.mxu0 0
        %1106 = vmatpush1.bf16.xpose.msra.mxu0 0
        %1107 = vmatprep.subr.bf16.mxu0 0
        %1108 = vmatpush1.bf16.xpose.msra.mxu0 0
        %1109 = vmatprep.subr.bf16.mxu0 0
        %1110 = vmatpush1.bf16.xpose.msra.mxu0 0
        %1111 = vmatprep.subr.bf16.mxu0 0
        %1112 = vmatpush1.bf16.xpose.msra.mxu0 0
        %1113 = vmatprep.subr.bf16.mxu0 0
        %1114 = vmatpush1.bf16.xpose.msra.mxu0 0
        %1115 = vmatprep.subr.bf16.mxu0 0
        %1116 = vmatpush1.bf16.xpose.msra.mxu0 0
        %1117 = vmatprep.subr.bf16.mxu0 0
        %1118 = vmatpush1.bf16.xpose.msra.mxu0 0
        %1119 = vmatprep.subr.bf16.mxu0 0
        %1120 = vmatpush1.bf16.xpose.msra.mxu0 0
        %1121 = vmatprep.subr.bf16.mxu0 0
        %1122 = vmatpush1.bf16.xpose.msra.mxu0 0
        %1123 = vmatprep.subr.bf16.mxu0 0
        %1124 = vmatpush1.bf16.xpose.msra.mxu0 0
        %1125 = vmatprep.subr.bf16.mxu0 0
        %1126 = vmatpush1.bf16.xpose.msra.mxu0 0
        %1127 = vmatprep.subr.bf16.mxu0 0
        %1128 = vmatpush1.bf16.xpose.msra.mxu0 0
        %1129 = vmatprep.subr.bf16.mxu0 0
        %1130 = vmatpush1.bf16.xpose.msra.mxu0 0
        %1131 = vmatprep.subr.bf16.mxu0 0
        %1132 = vmatpush1.bf16.xpose.msra.mxu0 0
        %1133 = vmatprep.subr.bf16.mxu0 0
        %1134 = vmatpush1.bf16.xpose.msra.mxu0 0
        %1135 = vmatprep.mubr.bf16.mxu0 0
        %1136 = vmatmul.mubr.bf16.gmra.mrb[0].mxu0 %v1098
        %v1137 = vpop.f32.mrb[0].mxu0
        %v1138 = vadd.f32 %v980, %v1137
        %v1139 = vpop.f32.mrb[0].mxu0
        %v1140 = vpop.f32.mrb[0].mxu0
        %v1141 = vpop.f32.mrb[0].mxu0
        %1142 = vdwg.mxu0
        %v1143 = vsel %vm982, %v1138, -inf
        %1144 = vmax.xlane.f32.xlu0 %v1143
        %v1145 = vpop.xlane.xlu0 %1144
        %v1146 = vsub.f32 %v1138, %v1145
        %v1147 = vmul.f32 %v1146, 1.442695
        %v1148 = vpow.pop %v1147
        %v1149 = vsel %vm982, %v1148, 0.0
        %1150 = vadd.xlane.f32.xlu0 %v1149
        %v1151 = vpop.xlane.xlu0 %1150
        %v1152 = vrcp.pop %v1151
        %v1153 = vmul.f32 %v1148, %v1152
        %v1154 = vpack.c.bf16 %v1153, %v1153
        %1155 = vrot.lane.b32.xlu0 %v974, 88
        %v1156 = vpop.permute.xlu0 %1155
        %v1158 = vsel %vm982, %v1154, 0
        %v1161 = vsel %vm1047, %v1156, 0
        %1163 = vmatprep.subr.bf16.mxu0 0
        %1164 = vmatpush1.bf16.msra.mxu0 %v1161
        %1165 = vmatprep.subr.bf16.mxu0 0
        %1166 = vmatpush1.bf16.msra.mxu0 0
        %1167 = vmatprep.subr.bf16.mxu0 0
        %1168 = vmatpush1.bf16.msra.mxu0 0
        %1169 = vmatprep.subr.bf16.mxu0 0
        %1170 = vmatpush1.bf16.msra.mxu0 0
        %1171 = vmatprep.subr.bf16.mxu0 0
        %1172 = vmatpush1.bf16.msra.mxu0 0
        %1173 = vmatprep.subr.bf16.mxu0 0
        %1174 = vmatpush1.bf16.msra.mxu0 0
        %1175 = vmatprep.subr.bf16.mxu0 0
        %1176 = vmatpush1.bf16.msra.mxu0 0
        %1177 = vmatprep.subr.bf16.mxu0 0
        %1178 = vmatpush1.bf16.msra.mxu0 0
        %1179 = vmatprep.subr.bf16.mxu0 0
        %1180 = vmatpush1.bf16.msra.mxu0 0
        %1181 = vmatprep.subr.bf16.mxu0 0
        %1182 = vmatpush1.bf16.msra.mxu0 0
        %1183 = vmatprep.subr.bf16.mxu0 0
        %1184 = vmatpush1.bf16.msra.mxu0 0
        %1185 = vmatprep.subr.bf16.mxu0 0
        %1186 = vmatpush1.bf16.msra.mxu0 0
        %1187 = vmatprep.subr.bf16.mxu0 0
        %1188 = vmatpush1.bf16.msra.mxu0 0
        %1189 = vmatprep.subr.bf16.mxu0 0
        %1190 = vmatpush1.bf16.msra.mxu0 0
        %1191 = vmatprep.subr.bf16.mxu0 0
        %1192 = vmatpush1.bf16.msra.mxu0 0
        %1193 = vmatprep.subr.bf16.mxu0 0
        %1194 = vmatpush1.bf16.msra.mxu0 0
        %1195 = vmatprep.mubr.bf16.mxu0 0
        %1196 = vmatmul.mubr.bf16.gmra.mrb[0].mxu0 %v1158
        %v1197 = vpop.f32.mrb[0].mxu0
        %v1198 = vadd.f32 0.0, %v1197
        %v1199 = vpop.f32.mrb[0].mxu0
        %v1200 = vpop.f32.mrb[0].mxu0
        %v1201 = vpop.f32.mrb[0].mxu0
        %1202 = vdwg.mxu0
        %1204 = vrot.lane.b32.xlu0 %v1198, 8
        %v1205 = vpop.permute.xlu0 %1204
        %vm1207 = vcmask 130112
        %1208 = vst.msk [vmem:[#allocation2] sm:$0xff] %vm1207, %v1205
        %1209 = vrot.lane.b32.xlu0 %v973, 112
        %v1210 = vpop.permute.xlu0 %1209
        %1211 = vrot.lane.b32.xlu0 %v974, 112
        %v1212 = vpop.permute.xlu0 %1211
        %v1214 = vsel %vm982, %v1210, 0
        %v1217 = vsel %vm982, %v1212, 0
        %1219 = vmatprep.subr.bf16.mxu0 0
        %1220 = vmatpush1.bf16.xpose.msra.mxu0 %v1217
        %1221 = vmatprep.subr.bf16.mxu0 0
        %1222 = vmatpush1.bf16.xpose.msra.mxu0 0
        %1223 = vmatprep.subr.bf16.mxu0 0
        %1224 = vmatpush1.bf16.xpose.msra.mxu0 0
        %1225 = vmatprep.subr.bf16.mxu0 0
        %1226 = vmatpush1.bf16.xpose.msra.mxu0 0
        %1227 = vmatprep.subr.bf16.mxu0 0
        %1228 = vmatpush1.bf16.xpose.msra.mxu0 0
        %1229 = vmatprep.subr.bf16.mxu0 0
        %1230 = vmatpush1.bf16.xpose.msra.mxu0 0
        %1231 = vmatprep.subr.bf16.mxu0 0
        %1232 = vmatpush1.bf16.xpose.msra.mxu0 0
        %1233 = vmatprep.subr.bf16.mxu0 0
        %1234 = vmatpush1.bf16.xpose.msra.mxu0 0
        %1235 = vmatprep.subr.bf16.mxu0 0
        %1236 = vmatpush1.bf16.xpose.msra.mxu0 0
        %1237 = vmatprep.subr.bf16.mxu0 0
        %1238 = vmatpush1.bf16.xpose.msra.mxu0 0
        %1239 = vmatprep.subr.bf16.mxu0 0
        %1240 = vmatpush1.bf16.xpose.msra.mxu0 0
        %1241 = vmatprep.subr.bf16.mxu0 0
        %1242 = vmatpush1.bf16.xpose.msra.mxu0 0
        %1243 = vmatprep.subr.bf16.mxu0 0
        %1244 = vmatpush1.bf16.xpose.msra.mxu0 0
        %1245 = vmatprep.subr.bf16.mxu0 0
        %1246 = vmatpush1.bf16.xpose.msra.mxu0 0
        %1247 = vmatprep.subr.bf16.mxu0 0
        %1248 = vmatpush1.bf16.xpose.msra.mxu0 0
        %1249 = vmatprep.subr.bf16.mxu0 0
        %1250 = vmatpush1.bf16.xpose.msra.mxu0 0
        %1251 = vmatprep.mubr.bf16.mxu0 0
        %1252 = vmatmul.mubr.bf16.gmra.mrb[0].mxu0 %v1214
        %v1253 = vpop.f32.mrb[0].mxu0
        %v1254 = vadd.f32 %v980, %v1253
        %v1255 = vpop.f32.mrb[0].mxu0
        %v1256 = vpop.f32.mrb[0].mxu0
        %v1257 = vpop.f32.mrb[0].mxu0
        %1258 = vdwg.mxu0
        %v1259 = vsel %vm982, %v1254, -inf
        %1260 = vmax.xlane.f32.xlu0 %v1259
        %v1261 = vpop.xlane.xlu0 %1260
        %v1262 = vsub.f32 %v1254, %v1261
        %v1263 = vmul.f32 %v1262, 1.442695
        %v1264 = vpow.pop %v1263
        %v1265 = vsel %vm982, %v1264, 0.0
        %1266 = vadd.xlane.f32.xlu0 %v1265
        %v1267 = vpop.xlane.xlu0 %1266
        %v1268 = vrcp.pop %v1267
        %v1269 = vmul.f32 %v1264, %v1268
        %v1270 = vpack.c.bf16 %v1269, %v1269
        %1271 = vrot.lane.b32.xlu0 %v974, 80
        %v1272 = vpop.permute.xlu0 %1271
        %v1274 = vsel %vm982, %v1270, 0
        %v1277 = vsel %vm1047, %v1272, 0
        %1279 = vmatprep.subr.bf16.mxu0 0
        %1280 = vmatpush1.bf16.msra.mxu0 %v1277
        %1281 = vmatprep.subr.bf16.mxu0 0
        %1282 = vmatpush1.bf16.msra.mxu0 0
        %1283 = vmatprep.subr.bf16.mxu0 0
        %1284 = vmatpush1.bf16.msra.mxu0 0
        %1285 = vmatprep.subr.bf16.mxu0 0
        %1286 = vmatpush1.bf16.msra.mxu0 0
        %1287 = vmatprep.subr.bf16.mxu0 0
        %1288 = vmatpush1.bf16.msra.mxu0 0
        %1289 = vmatprep.subr.bf16.mxu0 0
        %1290 = vmatpush1.bf16.msra.mxu0 0
        %1291 = vmatprep.subr.bf16.mxu0 0
        %1292 = vmatpush1.bf16.msra.mxu0 0
        %1293 = vmatprep.subr.bf16.mxu0 0
        %1294 = vmatpush1.bf16.msra.mxu0 0
        %1295 = vmatprep.subr.bf16.mxu0 0
        %1296 = vmatpush1.bf16.msra.mxu0 0
        %1297 = vmatprep.subr.bf16.mxu0 0
        %1298 = vmatpush1.bf16.msra.mxu0 0
        %1299 = vmatprep.subr.bf16.mxu0 0
        %1300 = vmatpush1.bf16.msra.mxu0 0
        %1301 = vmatprep.subr.bf16.mxu0 0
        %1302 = vmatpush1.bf16.msra.mxu0 0
        %1303 = vmatprep.subr.bf16.mxu0 0
        %1304 = vmatpush1.bf16.msra.mxu0 0
        %1305 = vmatprep.subr.bf16.mxu0 0
        %1306 = vmatpush1.bf16.msra.mxu0 0
        %1307 = vmatprep.subr.bf16.mxu0 0
        %1308 = vmatpush1.bf16.msra.mxu0 0
        %1309 = vmatprep.subr.bf16.mxu0 0
        %1310 = vmatpush1.bf16.msra.mxu0 0
        %1311 = vmatprep.mubr.bf16.mxu0 0
        %1312 = vmatmul.mubr.bf16.gmra.mrb[0].mxu0 %v1274
        %v1313 = vpop.f32.mrb[0].mxu0
        %v1314 = vadd.f32 0.0, %v1313
        %v1315 = vpop.f32.mrb[0].mxu0
        %v1316 = vpop.f32.mrb[0].mxu0
        %v1317 = vpop.f32.mrb[0].mxu0
        %1318 = vdwg.mxu0
        %1320 = vrot.lane.b32.xlu0 %v1314, 16
        %v1321 = vpop.permute.xlu0 %1320
        %vm1323 = vcmask 195712
        %1324 = vst.msk [vmem:[#allocation2] sm:$0xff] %vm1323, %v1321
        %1325 = vrot.lane.b32.xlu0 %v973, 104
        %v1326 = vpop.permute.xlu0 %1325
        %1327 = vrot.lane.b32.xlu0 %v974, 104
        %v1328 = vpop.permute.xlu0 %1327
        %v1330 = vsel %vm982, %v1326, 0
        %v1333 = vsel %vm982, %v1328, 0
        %1335 = vmatprep.subr.bf16.mxu0 0
        %1336 = vmatpush1.bf16.xpose.msra.mxu0 %v1333
        %1337 = vmatprep.subr.bf16.mxu0 0
        %1338 = vmatpush1.bf16.xpose.msra.mxu0 0
        %1339 = vmatprep.subr.bf16.mxu0 0
        %1340 = vmatpush1.bf16.xpose.msra.mxu0 0
        %1341 = vmatprep.subr.bf16.mxu0 0
        %1342 = vmatpush1.bf16.xpose.msra.mxu0 0
        %1343 = vmatprep.subr.bf16.mxu0 0
        %1344 = vmatpush1.bf16.xpose.msra.mxu0 0
        %1345 = vmatprep.subr.bf16.mxu0 0
        %1346 = vmatpush1.bf16.xpose.msra.mxu0 0
        %1347 = vmatprep.subr.bf16.mxu0 0
        %1348 = vmatpush1.bf16.xpose.msra.mxu0 0
        %1349 = vmatprep.subr.bf16.mxu0 0
        %1350 = vmatpush1.bf16.xpose.msra.mxu0 0
        %1351 = vmatprep.subr.bf16.mxu0 0
        %1352 = vmatpush1.bf16.xpose.msra.mxu0 0
        %1353 = vmatprep.subr.bf16.mxu0 0
        %1354 = vmatpush1.bf16.xpose.msra.mxu0 0
        %1355 = vmatprep.subr.bf16.mxu0 0
        %1356 = vmatpush1.bf16.xpose.msra.mxu0 0
        %1357 = vmatprep.subr.bf16.mxu0 0
        %1358 = vmatpush1.bf16.xpose.msra.mxu0 0
        %1359 = vmatprep.subr.bf16.mxu0 0
        %1360 = vmatpush1.bf16.xpose.msra.mxu0 0
        %1361 = vmatprep.subr.bf16.mxu0 0
        %1362 = vmatpush1.bf16.xpose.msra.mxu0 0
        %1363 = vmatprep.subr.bf16.mxu0 0
        %1364 = vmatpush1.bf16.xpose.msra.mxu0 0
        %1365 = vmatprep.subr.bf16.mxu0 0
        %1366 = vmatpush1.bf16.xpose.msra.mxu0 0
        %1367 = vmatprep.mubr.bf16.mxu0 0
        %1368 = vmatmul.mubr.bf16.gmra.mrb[0].mxu0 %v1330
        %v1369 = vpop.f32.mrb[0].mxu0
        %v1370 = vadd.f32 %v980, %v1369
        %v1371 = vpop.f32.mrb[0].mxu0
        %v1372 = vpop.f32.mrb[0].mxu0
        %v1373 = vpop.f32.mrb[0].mxu0
        %1374 = vdwg.mxu0
        %v1375 = vsel %vm982, %v1370, -inf
        %1376 = vmax.xlane.f32.xlu0 %v1375
        %v1377 = vpop.xlane.xlu0 %1376
        %v1378 = vsub.f32 %v1370, %v1377
        %v1379 = vmul.f32 %v1378, 1.442695
        %v1380 = vpow.pop %v1379
        %v1381 = vsel %vm982, %v1380, 0.0
        %1382 = vadd.xlane.f32.xlu0 %v1381
        %v1383 = vpop.xlane.xlu0 %1382
        %v1384 = vrcp.pop %v1383
        %v1385 = vmul.f32 %v1380, %v1384
        %v1386 = vpack.c.bf16 %v1385, %v1385
        %1387 = vrot.lane.b32.xlu0 %v974, 72
        %v1388 = vpop.permute.xlu0 %1387
        %v1390 = vsel %vm982, %v1386, 0
        %v1393 = vsel %vm1047, %v1388, 0
        %1395 = vmatprep.subr.bf16.mxu0 0
        %1396 = vmatpush1.bf16.msra.mxu0 %v1393
        %1397 = vmatprep.subr.bf16.mxu0 0
        %1398 = vmatpush1.bf16.msra.mxu0 0
        %1399 = vmatprep.subr.bf16.mxu0 0
        %1400 = vmatpush1.bf16.msra.mxu0 0
        %1401 = vmatprep.subr.bf16.mxu0 0
        %1402 = vmatpush1.bf16.msra.mxu0 0
        %1403 = vmatprep.subr.bf16.mxu0 0
        %1404 = vmatpush1.bf16.msra.mxu0 0
        %1405 = vmatprep.subr.bf16.mxu0 0
        %1406 = vmatpush1.bf16.msra.mxu0 0
        %1407 = vmatprep.subr.bf16.mxu0 0
        %1408 = vmatpush1.bf16.msra.mxu0 0
        %1409 = vmatprep.subr.bf16.mxu0 0
        %1410 = vmatpush1.bf16.msra.mxu0 0
        %1411 = vmatprep.subr.bf16.mxu0 0
        %1412 = vmatpush1.bf16.msra.mxu0 0
        %1413 = vmatprep.subr.bf16.mxu0 0
        %1414 = vmatpush1.bf16.msra.mxu0 0
        %1415 = vmatprep.subr.bf16.mxu0 0
        %1416 = vmatpush1.bf16.msra.mxu0 0
        %1417 = vmatprep.subr.bf16.mxu0 0
        %1418 = vmatpush1.bf16.msra.mxu0 0
        %1419 = vmatprep.subr.bf16.mxu0 0
        %1420 = vmatpush1.bf16.msra.mxu0 0
        %1421 = vmatprep.subr.bf16.mxu0 0
        %1422 = vmatpush1.bf16.msra.mxu0 0
        %1423 = vmatprep.subr.bf16.mxu0 0
        %1424 = vmatpush1.bf16.msra.mxu0 0
        %1425 = vmatprep.subr.bf16.mxu0 0
        %1426 = vmatpush1.bf16.msra.mxu0 0
        %1427 = vmatprep.mubr.bf16.mxu0 0
        %1428 = vmatmul.mubr.bf16.gmra.mrb[0].mxu0 %v1390
        %v1429 = vpop.f32.mrb[0].mxu0
        %v1430 = vadd.f32 0.0, %v1429
        %v1431 = vpop.f32.mrb[0].mxu0
        %v1432 = vpop.f32.mrb[0].mxu0
        %v1433 = vpop.f32.mrb[0].mxu0
        %1434 = vdwg.mxu0
        %1436 = vrot.lane.b32.xlu0 %v1430, 24
        %v1437 = vpop.permute.xlu0 %1436
        %vm1439 = vcmask 261312
        %1440 = vst.msk [vmem:[#allocation2] sm:$0xff] %vm1439, %v1437
        %v1441 = vld [vmem:[#allocation2] sm:$0xff]
        %v1442 = vpack.c.bf16 %v1441, %v1441
        %v1443 = vld [vmem:[#allocation15] sm:$0xf]
        %v1444 = vld [vmem:[#allocation15 + $0x4] sm:$0xf]
        %v1445 = vld [vmem:[#allocation15 + $0x8] sm:$0xf]
        %v1446 = vld [vmem:[#allocation15 + $0xc] sm:$0xf]
        %v1447 = vld [vmem:[#allocation17] sm:$0x1]
        %v1449 = vlaneseq
        %v1450 = vshrl.u32 %v1449, 7
        %v1451 = vsub.s32 0, %v1450
        %v1452 = vrot.slane %v1447, %v1451
        %v1458 = vunpack.c.l.b16 %v1443
        %v1459 = vunpack.c.l.b16 %v1444
        %v1460 = vunpack.c.l.b16 %v1445
        %v1461 = vunpack.c.l.b16 %v1446
        %v1462 = vpack.c.b16 %v1459, %v1458
        %v1463 = vpack.c.b16 %v1461, %v1460
        %v1467 = vsel %vm862, %v1442, 0
        %1469 = vmatprep.subr.bf16.mxu0 0
        %1470 = vmatpush1.bf16.msra.mxu0 %v1462
        %1471 = vmatprep.subr.bf16.mxu0 0
        %1472 = vmatpush1.bf16.msra.mxu0 %v1463
        %1473 = vmatprep.subr.bf16.mxu0 0
        %1474 = vmatpush1.bf16.msra.mxu0 0
        %1475 = vmatprep.subr.bf16.mxu0 0
        %1476 = vmatpush1.bf16.msra.mxu0 0
        %1477 = vmatprep.subr.bf16.mxu0 0
        %1478 = vmatpush1.bf16.msra.mxu0 0
        %1479 = vmatprep.subr.bf16.mxu0 0
        %1480 = vmatpush1.bf16.msra.mxu0 0
        %1481 = vmatprep.subr.bf16.mxu0 0
        %1482 = vmatpush1.bf16.msra.mxu0 0
        %1483 = vmatprep.subr.bf16.mxu0 0
        %1484 = vmatpush1.bf16.msra.mxu0 0
        %1485 = vmatprep.subr.bf16.mxu0 0
        %1486 = vmatpush1.bf16.msra.mxu0 0
        %1487 = vmatprep.subr.bf16.mxu0 0
        %1488 = vmatpush1.bf16.msra.mxu0 0
        %1489 = vmatprep.subr.bf16.mxu0 0
        %1490 = vmatpush1.bf16.msra.mxu0 0
        %1491 = vmatprep.subr.bf16.mxu0 0
        %1492 = vmatpush1.bf16.msra.mxu0 0
        %1493 = vmatprep.subr.bf16.mxu0 0
        %1494 = vmatpush1.bf16.msra.mxu0 0
        %1495 = vmatprep.subr.bf16.mxu0 0
        %1496 = vmatpush1.bf16.msra.mxu0 0
        %1497 = vmatprep.subr.bf16.mxu0 0
        %1498 = vmatpush1.bf16.msra.mxu0 0
        %1499 = vmatprep.subr.bf16.mxu0 0
        %1500 = vmatpush1.bf16.msra.mxu0 0
        %1501 = vmatprep.mubr.bf16.mxu0 0
        %1502 = vmatmul.mubr.bf16.gmra.mrb[0].mxu0 %v1467
        %v1503 = vpop.f32.mrb[0].mxu0
        %v1504 = vadd.f32 %v1452, %v1503
        %v1505 = vpop.f32.mrb[0].mxu0
        %v1506 = vpop.f32.mrb[0].mxu0
        %v1507 = vpop.f32.mrb[0].mxu0
        %1508 = vdwg.mxu0
        %v1509 = vadd.f32 %v837, %v1504
        %v1510 = vld [vmem:[#allocation18] sm:$0x1]
        %v1511 = vld [vmem:[#allocation20] sm:$0x1]
        %v1512 = vsel %vm862, %v1509, 0.0
        %1513 = vadd.xlane.f32.xlu0 %v1512
        %v1514 = vpop.xlane.xlu0 %1513
        %v1515 = vrcp.pop 32.0
        %v1516 = vmul.f32 %v1514, %v1515
        %v1517 = vsub.f32 %v1509, %v1516
        %v1518 = vmul.f32 %v1517, %v1517
        %v1519 = vsel %vm862, %v1518, 0.0
        %1520 = vadd.xlane.f32.xlu0 %v1519
        %v1521 = vpop.xlane.xlu0 %1520
        %v1522 = vmul.f32 %v1521, %v1515
        %v1523 = vadd.f32 %v1522, 1e-12
        %v1524 = vrsqrt.pop %v1523
        %v1525 = vmul.f32 %v1517, %v1524
        %v1527 = vlaneseq
        %v1528 = vshrl.u32 %v1527, 7
        %v1529 = vsub.s32 0, %v1528
        %v1530 = vrot.slane %v1510, %v1529
        %v1532 = vmul.f32 %v1525, %v1530
        %v1534 = vlaneseq
        %v1535 = vshrl.u32 %v1534, 7
        %v1536 = vsub.s32 0, %v1535
        %v1537 = vrot.slane %v1511, %v1536
        %v1539 = vadd.f32 %v1532, %v1537
        %v1540 = vpack.c.bf16 %v1539, %v1539
        %v1541 = vld [vmem:[#allocation21] sm:$0xf]
        %v1542 = vld [vmem:[#allocation21 + $0x4] sm:$0xf]
        %v1543 = vld [vmem:[#allocation21 + $0x8] sm:$0xf]
        %v1544 = vld [vmem:[#allocation21 + $0xc] sm:$0xf]
        %v1545 = vld [vmem:[#allocation23] sm:$0x1]
        %v1547 = vlaneseq
        %v1548 = vshrl.u32 %v1547, 7
        %v1549 = vsub.s32 0, %v1548
        %v1550 = vrot.slane %v1545, %v1549
        %v1556 = vunpack.c.l.b16 %v1541
        %v1557 = vunpack.c.l.b16 %v1542
        %v1558 = vunpack.c.l.b16 %v1543
        %v1559 = vunpack.c.l.b16 %v1544
        %v1560 = vpack.c.b16 %v1557, %v1556
        %v1561 = vpack.c.b16 %v1559, %v1558
        %v1565 = vsel %vm862, %v1540, 0
        %1567 = vmatprep.subr.bf16.mxu0 0
        %1568 = vmatpush1.bf16.msra.mxu0 %v1560
        %1569 = vmatprep.subr.bf16.mxu0 0
        %1570 = vmatpush1.bf16.msra.mxu0 %v1561
        %1571 = vmatprep.subr.bf16.mxu0 0
        %1572 = vmatpush1.bf16.msra.mxu0 0
        %1573 = vmatprep.subr.bf16.mxu0 0
        %1574 = vmatpush1.bf16.msra.mxu0 0
        %1575 = vmatprep.subr.bf16.mxu0 0
        %1576 = vmatpush1.bf16.msra.mxu0 0
        %1577 = vmatprep.subr.bf16.mxu0 0
        %1578 = vmatpush1.bf16.msra.mxu0 0
        %1579 = vmatprep.subr.bf16.mxu0 0
        %1580 = vmatpush1.bf16.msra.mxu0 0
        %1581 = vmatprep.subr.bf16.mxu0 0
        %1582 = vmatpush1.bf16.msra.mxu0 0
        %1583 = vmatprep.subr.bf16.mxu0 0
        %1584 = vmatpush1.bf16.msra.mxu0 0
        %1585 = vmatprep.subr.bf16.mxu0 0
        %1586 = vmatpush1.bf16.msra.mxu0 0
        %1587 = vmatprep.subr.bf16.mxu0 0
        %1588 = vmatpush1.bf16.msra.mxu0 0
        %1589 = vmatprep.subr.bf16.mxu0 0
        %1590 = vmatpush1.bf16.msra.mxu0 0
        %1591 = vmatprep.subr.bf16.mxu0 0
        %1592 = vmatpush1.bf16.msra.mxu0 0
        %1593 = vmatprep.subr.bf16.mxu0 0
        %1594 = vmatpush1.bf16.msra.mxu0 0
        %1595 = vmatprep.subr.bf16.mxu0 0
        %1596 = vmatpush1.bf16.msra.mxu0 0
        %1597 = vmatprep.subr.bf16.mxu0 0
        %1598 = vmatpush1.bf16.msra.mxu0 0
        %1599 = vmatprep.mubr.bf16.mxu0 0
        %1600 = vmatmul.mubr.bf16.gmra.mrb[0].mxu0 %v1565
        %v1601 = vpop.f32.mrb[0].mxu0
        %v1602 = vadd.f32 %v1550, %v1601
        %v1603 = vpop.f32.mrb[0].mxu0
        %v1604 = vpop.f32.mrb[0].mxu0
        %v1605 = vpop.f32.mrb[0].mxu0
        %1606 = vdwg.mxu0
        %v1607 = vmul.f32 %v1602, 0.70710677
        %v1608 = vand.u32 2147483647, %v1607
        %v1609 = vmul.f32 %v1608, 0.3275911
        %v1610 = vadd.f32 %v1609, 1.0
        %v1611 = vrcp.pop %v1610
        %v1612 = vmul.f32 1.0, %v1611
        %v1613 = vmul.f32 %v1612, 1.0614054
        %v1614 = vsub.f32 %v1613, 1.4531521
        %v1615 = vmul.f32 %v1614, %v1612
        %v1616 = vadd.f32 %v1615, 1.4214138
        %v1617 = vmul.f32 %v1616, %v1612
        %v1618 = vsub.f32 %v1617, 0.28449672
        %v1619 = vmul.f32 %v1618, %v1612
        %v1620 = vadd.f32 %v1619, 0.2548296
        %v1621 = vmul.f32 %v1620, %v1612
        %v1622 = vsub.f32 0.0, %v1608
        %v1623 = vmul.f32 %v1622, %v1608
        %v1624 = vmul.f32 %v1623, 1.442695
        %v1625 = vpow.pop %v1624
        %v1626 = vmul.f32 %v1621, %v1625
        %v1627 = vsub.f32 1.0, %v1626
        %vm1628 = vcmp.lt.f32.partialorder %v1607, 0.0
        %v1629 = vsub.f32 0.0, %v1627
        %v1630 = vsel %vm1628, %v1629, %v1627
        %v1631 = vmul.f32 %v1602, 0.5
        %v1632 = vadd.f32 %v1630, 1.0
        %v1633 = vmul.f32 %v1631, %v1632
        %v1634 = vpack.c.bf16 %v1633, %v1633
        %v1635 = vld [vmem:[#allocation24] sm:$0xf]
        %v1636 = vld [vmem:[#allocation24 + $0x4] sm:$0xf]
        %v1637 = vld [vmem:[#allocation24 + $0x8] sm:$0xf]
        %v1638 = vld [vmem:[#allocation24 + $0xc] sm:$0xf]
        %v1639 = vld [vmem:[#allocation24 + $0x10] sm:$0xf]
        %v1640 = vld [vmem:[#allocation24 + $0x14] sm:$0xf]
        %v1641 = vld [vmem:[#allocation24 + $0x18] sm:$0xf]
        %v1642 = vld [vmem:[#allocation24 + $0x1c] sm:$0xf]
        %v1643 = vld [vmem:[#allocation26] sm:$0x1]
        %v1645 = vlaneseq
        %v1646 = vshrl.u32 %v1645, 7
        %v1647 = vsub.s32 0, %v1646
        %v1648 = vrot.slane %v1643, %v1647
        %v1658 = vunpack.c.l.b16 %v1635
        %v1659 = vunpack.c.l.b16 %v1636
        %v1660 = vunpack.c.l.b16 %v1637
        %v1661 = vunpack.c.l.b16 %v1638
        %v1662 = vunpack.c.l.b16 %v1639
        %v1663 = vunpack.c.l.b16 %v1640
        %v1664 = vunpack.c.l.b16 %v1641
        %v1665 = vunpack.c.l.b16 %v1642
        %v1666 = vpack.c.b16 %v1659, %v1658
        %v1667 = vpack.c.b16 %v1661, %v1660
        %v1668 = vpack.c.b16 %v1663, %v1662
        %v1669 = vpack.c.b16 %v1665, %v1664
        %vm1674 = vcmask 523264
        %v1676 = vsel %vm1674, %v1634, 0
        %1678 = vmatprep.subr.bf16.mxu0 0
        %1679 = vmatpush1.bf16.msra.mxu0 %v1666
        %1680 = vmatprep.subr.bf16.mxu0 0
        %1681 = vmatpush1.bf16.msra.mxu0 %v1667
        %1682 = vmatprep.subr.bf16.mxu0 0
        %1683 = vmatpush1.bf16.msra.mxu0 %v1668
        %1684 = vmatprep.subr.bf16.mxu0 0
        %1685 = vmatpush1.bf16.msra.mxu0 %v1669
        %1686 = vmatprep.subr.bf16.mxu0 0
        %1687 = vmatpush1.bf16.msra.mxu0 0
        %1688 = vmatprep.subr.bf16.mxu0 0
        %1689 = vmatpush1.bf16.msra.mxu0 0
        %1690 = vmatprep.subr.bf16.mxu0 0
        %1691 = vmatpush1.bf16.msra.mxu0 0
        %1692 = vmatprep.subr.bf16.mxu0 0
        %1693 = vmatpush1.bf16.msra.mxu0 0
        %1694 = vmatprep.subr.bf16.mxu0 0
        %1695 = vmatpush1.bf16.msra.mxu0 0
        %1696 = vmatprep.subr.bf16.mxu0 0
        %1697 = vmatpush1.bf16.msra.mxu0 0
        %1698 = vmatprep.subr.bf16.mxu0 0
        %1699 = vmatpush1.bf16.msra.mxu0 0
        %1700 = vmatprep.subr.bf16.mxu0 0
        %1701 = vmatpush1.bf16.msra.mxu0 0
        %1702 = vmatprep.subr.bf16.mxu0 0
        %1703 = vmatpush1.bf16.msra.mxu0 0
        %1704 = vmatprep.subr.bf16.mxu0 0
        %1705 = vmatpush1.bf16.msra.mxu0 0
        %1706 = vmatprep.subr.bf16.mxu0 0
        %1707 = vmatpush1.bf16.msra.mxu0 0
        %1708 = vmatprep.subr.bf16.mxu0 0
        %1709 = vmatpush1.bf16.msra.mxu0 0
        %1710 = vmatprep.mubr.bf16.mxu0 0
        %1711 = vmatmul.mubr.bf16.gmra.mrb[0].mxu0 %v1676
        %v1712 = vpop.f32.mrb[0].mxu0
        %v1713 = vadd.f32 %v1648, %v1712
        %v1714 = vpop.f32.mrb[0].mxu0
        %v1715 = vpop.f32.mrb[0].mxu0
        %v1716 = vpop.f32.mrb[0].mxu0
        %1717 = vdwg.mxu0
        %v1718 = vadd.f32 %v1713, %v1539
        %v1719 = vld [vmem:[#allocation27] sm:$0x1]
        %v1720 = vld [vmem:[#allocation29] sm:$0x1]
        %v1721 = vsel %vm862, %v1718, 0.0
        %1722 = vadd.xlane.f32.xlu0 %v1721
        %v1723 = vpop.xlane.xlu0 %1722
        %v1724 = vmul.f32 %v1723, %v1515
        %v1725 = vsub.f32 %v1718, %v1724
        %v1726 = vmul.f32 %v1725, %v1725
        %v1727 = vsel %vm862, %v1726, 0.0
        %1728 = vadd.xlane.f32.xlu0 %v1727
        %v1729 = vpop.xlane.xlu0 %1728
        %v1730 = vmul.f32 %v1729, %v1515
        %v1731 = vadd.f32 %v1730, 1e-12
        %v1732 = vrsqrt.pop %v1731
        %v1733 = vmul.f32 %v1725, %v1732
        %v1735 = vlaneseq
        %v1736 = vshrl.u32 %v1735, 7
        %v1737 = vsub.s32 0, %v1736
        %v1738 = vrot.slane %v1719, %v1737
        %v1740 = vmul.f32 %v1733, %v1738
        %v1742 = vlaneseq
        %v1743 = vshrl.u32 %v1742, 7
        %v1744 = vsub.s32 0, %v1743
        %v1745 = vrot.slane %v1720, %v1744
        %v1747 = vadd.f32 %v1740, %v1745
        %1748 = vst.msk [vmem:[%s833] sm:$0xff] %vm862, %v1747
        %s1749 = sand.u32 %s440, 1
        %s1750 = scalar_lea.sflag [#allocation5], %s1749
        %s1751 = sand.u32 %s440, 1
        %s1752 = smul.addr %s1751, 8
        %s1753 = scalar_lea.vmem [#allocation30], %s1752
        // Predicated region
        $region157: #{tpu_custom_call.1} parent=87 // pred_check
          %p1754 = pneg %p450
        $region158: #{tpu_custom_call.1} parent=87 // pred_check_branch
          %1756 = sbr.rel (%p1754) target = $region160
        $region159: #{tpu_custom_call.1} parent=87 // pred_region
          %s1758 = ssub.s32 128, 128
          %1759 = vsyncadd %s1750, %s1758
          %s1760 = sadd.s32 %s49, %s48
          %s1761 = smul.addr %s1760, 128
          %s1762 = scalar_lea.hbm %s17, %s1761
          %s1764 = sshll.u32 %s1753, 4
          %s1765 = int_to_ptr.vmem [resolvable:$true] %s1764
          %1767 = dma.vmem_to_hbm [thread:$0]  %s1765, 128, %s1762, %s1750
        $region160: #{tpu_custom_call.1} parent=87 // pred_fallthru
          _
      $region88: #{tpu_custom_call.1} parent=5 // pred_fallthru
        _
      %p1768 = scmp.le.s32.totalorder 2, %s39
      // Predicated region
      $region161: #{tpu_custom_call.1} parent=5 // pred_check
        %p1769 = pneg %p1768
      $region162: #{tpu_custom_call.1} parent=5 // pred_check_branch
        %1771 = sbr.rel (%p1769) target = $region164
      $region163: #{tpu_custom_call.1} parent=5 // pred_region
        %s1772 = ssub.s32 %s39, 2
        // Predicated region
        $region165: #{tpu_custom_call.1} parent=163 // pred_check
          %p1773 = pneg %p456
        $region166: #{tpu_custom_call.1} parent=163 // pred_check_branch
          %1775 = sbr.rel (%p1773) target = $region168
        $region167: #{tpu_custom_call.1} parent=163 // pred_region
          %s1776 = sand.u32 %s441, 1
          %s1777 = scalar_lea.sflag [#allocation5], %s1776
          %s1778 = sand.u32 %s441, 1
          %s1779 = smul.addr %s1778, 8
          %s1780 = scalar_lea.vmem [#allocation30], %s1779
          %1781 = dma.done %s1777, 128
        $region168: #{tpu_custom_call.1} parent=163 // pred_fallthru
          _
      $region164: #{tpu_custom_call.1} parent=5 // pred_fallthru
        _
    $region6: #{tpu_custom_call.1} parent=1 // loop_footer
      %s43 = sadd.s32 1, %s39
    $region7: #{tpu_custom_call.1} parent=1 // loop_footer_branch
      %38 = sbr.rel target = $region3
    $region8: #{tpu_custom_call.1} parent=1 // loop_exit
      _
    %1782 = vsyncpa [#allocation4], 1
    %s1783 = scalar_lea.sflag [#allocation4], 1
    %1784 = vsyncpa %s1783, 1
    %1785 = vsyncpa [#allocation7], 1
    %s1786 = scalar_lea.sflag [#allocation7], 1
    %1787 = vsyncpa %s1786, 1
    %1788 = vsyncpa [#allocation10], 1
    %1789 = vsyncpa [#allocation13], 1
    %1790 = vsyncpa [#allocation16], 1
    %1791 = vsyncpa [#allocation19], 1
    %1792 = vsyncpa [#allocation22], 1
    %1793 = vsyncpa [#allocation25], 1
    %1794 = vsyncpa [#allocation28], 1
    %1795 = vsyncpa [#allocation5], 1
    %s1796 = scalar_lea.sflag [#allocation5], 1
    %1797 = vsyncpa %s1796, 1

</llo_original>
